<compile_context>
chip_gen: v6e
topology: v6e:2x2x1
jax: 0.10.0
libtpu: 0.0.40
codegen_flags: <defaults>
</compile_context>

<pallas_src>
import functools

import jax
import jax.numpy as jnp
from jax import lax
from jax.experimental import pallas as pl
from jax.experimental.pallas import tpu as pltpu


# ----------------------------- helpers --------------------------------------

def _pick_tile(dim, candidates=(512, 256, 128)):
    """Largest MXU-friendly tile that divides `dim`, else the full dim."""
    for c in candidates:
        if dim % c == 0:
            return c
    return dim  # block == full array dim is always legal


# ----------------------------- tiled linear ----------------------------------

def _linear_kernel(x_ref, w_ref, b_ref, o_ref, acc_ref):
    # x: (tm, tk), w: (tk, tn), b: (1, tn), o/acc: (tm, tn)
    @pl.when(pl.program_id(2) == 0)
    def _():
        acc_ref[...] = jnp.zeros_like(acc_ref)

    acc_ref[...] += jnp.dot(x_ref[...], w_ref[...],
                            preferred_element_type=jnp.float32)

    @pl.when(pl.program_id(2) == pl.num_programs(2) - 1)
    def _():
        o_ref[...] = (acc_ref[...] + b_ref[...]).astype(o_ref.dtype)


def pallas_linear(x2d, w, b):
    """x2d: (M, K), w: (K, N), b: (N,) -> (M, N) = x2d @ w + b."""
    M, K = x2d.shape
    K2, N = w.shape
    assert K == K2
    tm, tn, tk = _pick_tile(M), _pick_tile(N), _pick_tile(K)
    b2d = b.reshape(1, N)
    return pl.pallas_call(
        _linear_kernel,
        out_shape=jax.ShapeDtypeStruct((M, N), jnp.float32),
        grid_spec=pltpu.PrefetchScalarGridSpec(
            num_scalar_prefetch=0,
            grid=(M // tm, N // tn, K // tk),
            in_specs=[
                pl.BlockSpec((tm, tk), lambda i, j, k: (i, k)),
                pl.BlockSpec((tk, tn), lambda i, j, k: (k, j)),
                pl.BlockSpec((1, tn), lambda i, j, k: (0, j)),
            ],
            out_specs=pl.BlockSpec((tm, tn), lambda i, j, k: (i, j)),
            scratch_shapes=[pltpu.VMEM((tm, tn), jnp.float32)],
        ),
        compiler_params=pltpu.CompilerParams(
            dimension_semantics=("parallel", "parallel", "arbitrary")),
    )(x2d, w, b2d)


# ----------------------------- attention kernel ------------------------------

def _mha_kernel(q_ref, k_ref, v_ref, o_ref, w_ref, *, num_heads, depth):
    # Blocks: q (1, Sq, d_model), k/v (1, Sk, d_model),
    #         o (1, Sq, d_model), w (1, H, Sq, Sk). Heads sliced in-kernel.
    q = q_ref[0]                                   # (Sq, d_model)
    k = k_ref[0]                                   # (Sk, d_model)
    v = v_ref[0]                                   # (Sk, d_model)
    scale = 1.0 / jnp.sqrt(jnp.float32(depth))

    out_chunks = []
    for h in range(num_heads):
        lo, hi = h * depth, (h + 1) * depth
        q_h = q[:, lo:hi].astype(jnp.float32) * scale   # pre-scale q (Sq*depth work)
        k_h = k[:, lo:hi]
        v_h = v[:, lo:hi]
        # contract last dim of both operands: no explicit k.T / XLU transpose
        scores = lax.dot_general(
            q_h, k_h, dimension_numbers=(((1,), (1,)), ((), ())),
            preferred_element_type=jnp.float32)          # (Sq, Sk)
        m = jnp.max(scores, axis=-1, keepdims=True)
        e = jnp.exp(scores - m)
        denom = jnp.sum(e, axis=-1, keepdims=True)
        attn = e * pl.reciprocal(denom, approx=True)     # EUP reciprocal
        w_ref[0, h] = attn.astype(w_ref.dtype)
        out_chunks.append(jnp.dot(attn, v_h, preferred_element_type=jnp.float32))

    # one lane-dense (Sq, d_model) store instead of H narrow masked stores
    o_ref[0] = jnp.concatenate(out_chunks, axis=-1).astype(o_ref.dtype)


def pallas_attention(q, k, v, num_heads):
    """q: (B, Sq, d_model), k/v: (B, Sk, d_model) ->
       (out (B, Sq, d_model), attn (B, H, Sq, Sk))."""
    B, Sq, d_model = q.shape
    Sk = k.shape[1]
    depth = d_model // num_heads
    kernel = functools.partial(_mha_kernel, num_heads=num_heads, depth=depth)
    out, attn = pl.pallas_call(
        kernel,
        out_shape=(
            jax.ShapeDtypeStruct((B, Sq, d_model), jnp.float32),
            jax.ShapeDtypeStruct((B, num_heads, Sq, Sk), jnp.float32),
        ),
        grid=(B,),
        in_specs=[
            pl.BlockSpec((1, Sq, d_model), lambda b: (b, 0, 0)),
            pl.BlockSpec((1, Sk, d_model), lambda b: (b, 0, 0)),
            pl.BlockSpec((1, Sk, d_model), lambda b: (b, 0, 0)),
        ],
        out_specs=(
            pl.BlockSpec((1, Sq, d_model), lambda b: (b, 0, 0)),
            pl.BlockSpec((1, num_heads, Sq, Sk), lambda b: (b, 0, 0, 0)),
        ),
        compiler_params=pltpu.CompilerParams(
            dimension_semantics=("parallel",)),
    )(q, k, v)
    return out, attn


# ----------------------------- module forward --------------------------------

def multi_head_attention(params, query, key, value, num_heads, fuse_qkv=False):
    """Pallas implementation of MultiHeadAttention.forward.

    fuse_qkv=True is only valid when query/key/value are the same tensor
    (self-attention, as in EncoderLayer and DecoderLayer.mha1); it fuses the
    three projections into a single wide matmul.
    """
    B, Sq, d_model = query.shape

    if fuse_qkv:
        w_qkv = jnp.concatenate(
            [params["wq_w"], params["wk_w"], params["wv_w"]], axis=1)
        b_qkv = jnp.concatenate(
            [params["wq_b"], params["wk_b"], params["wv_b"]], axis=0)
        qkv = pallas_linear(query.reshape(B * Sq, d_model), w_qkv, b_qkv)
        qkv = qkv.reshape(B, Sq, 3 * d_model)
        q = qkv[..., :d_model]
        k = qkv[..., d_model:2 * d_model]
        v = qkv[..., 2 * d_model:]
    else:
        def proj(x, w, b):
            n, s, _ = x.shape
            return pallas_linear(x.reshape(n * s, d_model), w, b).reshape(n, s, d_model)
        q = proj(query, params["wq_w"], params["wq_b"])
        k = proj(key, params["wk_w"], params["wk_b"])
        v = proj(value, params["wv_w"], params["wv_b"])

    # heads are sliced inside the kernel: no split/merge transposes in HBM
    out, attn = pallas_attention(q, k, v, num_heads)

    out = pallas_linear(out.reshape(B * Sq, d_model),
                        params["dense_w"], params["dense_b"]).reshape(B, Sq, d_model)
    return out, attn


# ----------------------------- reference (pure JAX) ---------------------------

def multi_head_attention_ref(params, query, key, value, num_heads):
    B, Sq, d_model = query.shape
    Sk = key.shape[1]
    depth = d_model // num_heads

    def lin(x, w, b):
        return x @ w + b

    q = lin(query, params["wq_w"], params["wq_b"])
    k = lin(key, params["wk_w"], params["wk_b"])
    v = lin(value, params["wv_w"], params["wv_b"])

    def split(x, s):
        return x.reshape(B, s, num_heads, depth).transpose(0, 2, 1, 3)

    qh, kh, vh = split(q, Sq), split(k, Sk), split(v, Sk)
    scores = jnp.einsum("bhqd,bhkd->bhqk", qh, kh) / jnp.sqrt(jnp.float32(depth))
    attn = jax.nn.softmax(scores, axis=-1)
    out = jnp.einsum("bhqk,bhkd->bhqd", attn, vh)
    out = out.transpose(0, 2, 1, 3).reshape(B, Sq, d_model)
    out = lin(out, params["dense_w"], params["dense_b"])
    return out, attn


# ----------------------------- params / main ----------------------------------

def make_params(key, d_model):
    ks = jax.random.split(key, 8)
    scale = 1.0 / jnp.sqrt(jnp.float32(d_model))

    def w(k):
        return jax.random.uniform(k, (d_model, d_model), jnp.float32, -scale, scale)

    def b(k):
        return jax.random.uniform(k, (d_model,), jnp.float32, -scale, scale)

    return {
        "wq_w": w(ks[0]), "wq_b": b(ks[1]),
        "wk_w": w(ks[2]), "wk_b": b(ks[3]),
        "wv_w": w(ks[4]), "wv_b": b(ks[5]),
        "dense_w": w(ks[6]), "dense_b": b(ks[7]),
    }


if __name__ == "__main__":
    # Small shapes consistent with the module (B, S, d_model), d_model % H == 0.
    B, Sq, Sk, d_model, num_heads = 2, 8, 16, 128, 4

    root = jax.random.PRNGKey(0)
    k_p, k_x, k_y = jax.random.split(root, 3)
    params = make_params(k_p, d_model)
    x = jax.random.normal(k_x, (B, Sq, d_model), jnp.float32)   # decoder/self input
    y = jax.random.normal(k_y, (B, Sk, d_model), jnp.float32)   # encoder output

    # Self-attention usage (EncoderLayer / DecoderLayer.mha1): fused QKV path.
    mha_self = jax.jit(functools.partial(
        multi_head_attention, num_heads=num_heads, fuse_qkv=True))
    out_s, attn_s = mha_self(params, x, x, x)
    out_s = jax.block_until_ready(out_s)
    attn_s = jax.block_until_ready(attn_s)

    # Cross-attention usage (DecoderLayer.mha2): separate projections.
    mha_cross = jax.jit(functools.partial(
        multi_head_attention, num_heads=num_heads, fuse_qkv=False))
    out_c, attn_c = mha_cross(params, x, y, y)
    out_c = jax.block_until_ready(out_c)
    attn_c = jax.block_until_ready(attn_c)

    # Sanity checks against the pure-JAX reference. Tolerance is loosened vs
    # 1e-5 because the softmax denominator uses the EUP approximate reciprocal.
    out_s_ref, attn_s_ref = multi_head_attention_ref(params, x, x, x, num_heads)
    out_c_ref, attn_c_ref = multi_head_attention_ref(params, x, y, y, num_heads)

    assert out_s.shape == (B, Sq, d_model)
    assert attn_s.shape == (B, num_heads, Sq, Sq)
    assert out_c.shape == (B, Sq, d_model)
    assert attn_c.shape == (B, num_heads, Sq, Sk)

    tol = dict(atol=2e-2, rtol=2e-2)
    assert jnp.allclose(out_s, out_s_ref, **tol)
    assert jnp.allclose(attn_s, attn_s_ref, **tol)
    assert jnp.allclose(out_c, out_c_ref, **tol)
    assert jnp.allclose(attn_c, attn_c_ref, **tol)

    print("KERNEL_OK")
</pallas_src>

<mosaic_0001>
module attributes {stable_mosaic.version = 11 : i64} {
  func.func @_linear_kernel(%arg0: i32, %arg1: i32, %arg2: i32, %arg3: memref<16x128xf32, #tpu.memory_space<vmem>>, %arg4: memref<128x128xf32, #tpu.memory_space<vmem>>, %arg5: memref<1x128xf32, #tpu.memory_space<vmem>>, %arg6: memref<16x128xf32, #tpu.memory_space<vmem>>, %arg7: memref<16x128xf32, #tpu.memory_space<vmem>>) attributes {dimension_semantics = [#tpu.dimension_semantics<parallel>, #tpu.dimension_semantics<parallel>, #tpu.dimension_semantics<arbitrary>], iteration_bounds = array<i64: 1, 3, 1>, scalar_prefetch = 0 : i64, scratch_operands = 1 : i64, tpu.core_type = #tpu.core_type<tc>, window_params = [{transform_indices = @transform_0, window_bounds = array<i64: 16, 128>}, {transform_indices = @transform_1, window_bounds = array<i64: 128, 128>}, {transform_indices = @transform_2, window_bounds = array<i64: 1, 128>}, {transform_indices = @transform_3, window_bounds = array<i64: 16, 128>}]} {
    %c0_i32 = arith.constant 0 : i32
    %0 = arith.cmpi eq, %arg2, %c0_i32 : i32
    %1 = arith.extui %0 : i1 to i32
    %c0_i32_0 = arith.constant 0 : i32
    %2 = arith.cmpi ne, %1, %c0_i32_0 : i32
    scf.if %2 {
      %cst_10 = arith.constant 0.000000e+00 : f32
      %12 = vector.broadcast %cst_10 : f32 to vector<16x128xf32>
      %c0_11 = arith.constant 0 : index
      %c0_12 = arith.constant 0 : index
      %13 = vector.load %arg7[%c0_11, %c0_12] : memref<16x128xf32, #tpu.memory_space<vmem>>, vector<16x128xf32>
      tpu.vector_store %arg7[%c0_11, %c0_12], %12 {strides = array<i32>} : memref<16x128xf32, #tpu.memory_space<vmem>>, vector<16x128xf32>,
    } else {
    }
    %c0 = arith.constant 0 : index
    %c0_1 = arith.constant 0 : index
    %3 = vector.load %arg7[%c0, %c0_1] : memref<16x128xf32, #tpu.memory_space<vmem>>, vector<16x128xf32>
    %c0_2 = arith.constant 0 : index
    %c0_3 = arith.constant 0 : index
    %4 = vector.load %arg3[%c0_2, %c0_3] : memref<16x128xf32, #tpu.memory_space<vmem>>, vector<16x128xf32>
    %c0_4 = arith.constant 0 : index
    %c0_5 = arith.constant 0 : index
    %5 = vector.load %arg4[%c0_4, %c0_5] : memref<128x128xf32, #tpu.memory_space<vmem>>, vector<128x128xf32>
    %cst = arith.constant dense<0.000000e+00> : vector<16x128xf32>
    %6 = tpu.matmul %4, %5, %cst {dimension_numbers = #tpu.dot_dimension_numbers<[1], [0], [0], [1], [0, 0, 1, 1], [], []>} : vector<16x128xf32>, vector<128x128xf32>, vector<16x128xf32> -> vector<16x128xf32>
    %7 = arith.addf %3, %6 : vector<16x128xf32>
    %c0_6 = arith.constant 0 : index
    %c0_7 = arith.constant 0 : index
    %8 = vector.load %arg7[%c0_6, %c0_7] : memref<16x128xf32, #tpu.memory_space<vmem>>, vector<16x128xf32>
    tpu.vector_store %arg7[%c0_6, %c0_7], %7 {strides = array<i32>} : memref<16x128xf32, #tpu.memory_space<vmem>>, vector<16x128xf32>,
    %c0_i32_8 = arith.constant 0 : i32
    %9 = arith.cmpi eq, %arg2, %c0_i32_8 : i32
    %10 = arith.extui %9 : i1 to i32
    %c0_i32_9 = arith.constant 0 : i32
    %11 = arith.cmpi ne, %10, %c0_i32_9 : i32
    scf.if %11 {
      %c0_10 = arith.constant 0 : index
      %c0_11 = arith.constant 0 : index
      %12 = vector.load %arg7[%c0_10, %c0_11] : memref<16x128xf32, #tpu.memory_space<vmem>>, vector<16x128xf32>
      %c0_12 = arith.constant 0 : index
      %c0_13 = arith.constant 0 : index
      %13 = vector.load %arg5[%c0_12, %c0_13] : memref<1x128xf32, #tpu.memory_space<vmem>>, vector<1x128xf32>
      %14 = vector.broadcast %13 : vector<1x128xf32> to vector<16x128xf32>
      %15 = arith.addf %12, %14 : vector<16x128xf32>
      %c0_14 = arith.constant 0 : index
      %c0_15 = arith.constant 0 : index
      %16 = vector.load %arg6[%c0_14, %c0_15] : memref<16x128xf32, #tpu.memory_space<vmem>>, vector<16x128xf32>
      tpu.vector_store %arg6[%c0_14, %c0_15], %15 {strides = array<i32>} : memref<16x128xf32, #tpu.memory_space<vmem>>, vector<16x128xf32>,
    } else {
    }
    return
  }
  func.func @transform_0(%arg0: i32, %arg1: i32, %arg2: i32) -> (i32, i32) {
    %c0_i32 = arith.constant 0 : i32
    return %arg0, %arg2 : i32, i32
  }
  func.func @transform_1(%arg0: i32, %arg1: i32, %arg2: i32) -> (i32, i32) {
    %c0_i32 = arith.constant 0 : i32
    return %arg2, %arg1 : i32, i32
  }
  func.func @transform_2(%arg0: i32, %arg1: i32, %arg2: i32) -> (i32, i32) {
    %c0_i32 = arith.constant 0 : i32
    %c0_i32_0 = arith.constant 0 : i32
    return %c0_i32, %arg1 : i32, i32
  }
  func.func @transform_3(%arg0: i32, %arg1: i32, %arg2: i32) -> (i32, i32) {
    %c0_i32 = arith.constant 0 : i32
    return %arg0, %arg1 : i32, i32
  }
}

module attributes {stable_mosaic.version = 11 : i64} {
  func.func @_linear_kernel(%arg0: i32, %arg1: i32, %arg2: i32, %arg3: memref<16x128xf32, #tpu.memory_space<vmem>>, %arg4: memref<128x128xf32, #tpu.memory_space<vmem>>, %arg5: memref<1x128xf32, #tpu.memory_space<vmem>>, %arg6: memref<16x128xf32, #tpu.memory_space<vmem>>, %arg7: memref<16x128xf32, #tpu.memory_space<vmem>>) attributes {dimension_semantics = [#tpu.dimension_semantics<parallel>, #tpu.dimension_semantics<parallel>, #tpu.dimension_semantics<arbitrary>], iteration_bounds = array<i64: 1, 1, 1>, scalar_prefetch = 0 : i64, scratch_operands = 1 : i64, tpu.core_type = #tpu.core_type<tc>, window_params = [{transform_indices = @transform_0, window_bounds = array<i64: 16, 128>}, {transform_indices = @transform_1, window_bounds = array<i64: 128, 128>}, {transform_indices = @transform_2, window_bounds = array<i64: 1, 128>}, {transform_indices = @transform_3, window_bounds = array<i64: 16, 128>}]} {
    %c0_i32 = arith.constant 0 : i32
    %0 = arith.cmpi eq, %arg2, %c0_i32 : i32
    %1 = arith.extui %0 : i1 to i32
    %c0_i32_0 = arith.constant 0 : i32
    %2 = arith.cmpi ne, %1, %c0_i32_0 : i32
    scf.if %2 {
      %cst_10 = arith.constant 0.000000e+00 : f32
      %12 = vector.broadcast %cst_10 : f32 to vector<16x128xf32>
      %c0_11 = arith.constant 0 : index
      %c0_12 = arith.constant 0 : index
      %13 = vector.load %arg7[%c0_11, %c0_12] : memref<16x128xf32, #tpu.memory_space<vmem>>, vector<16x128xf32>
      tpu.vector_store %arg7[%c0_11, %c0_12], %12 {strides = array<i32>} : memref<16x128xf32, #tpu.memory_space<vmem>>, vector<16x128xf32>,
    } else {
    }
    %c0 = arith.constant 0 : index
    %c0_1 = arith.constant 0 : index
    %3 = vector.load %arg7[%c0, %c0_1] : memref<16x128xf32, #tpu.memory_space<vmem>>, vector<16x128xf32>
    %c0_2 = arith.constant 0 : index
    %c0_3 = arith.constant 0 : index
    %4 = vector.load %arg3[%c0_2, %c0_3] : memref<16x128xf32, #tpu.memory_space<vmem>>, vector<16x128xf32>
    %c0_4 = arith.constant 0 : index
    %c0_5 = arith.constant 0 : index
    %5 = vector.load %arg4[%c0_4, %c0_5] : memref<128x128xf32, #tpu.memory_space<vmem>>, vector<128x128xf32>
    %cst = arith.constant dense<0.000000e+00> : vector<16x128xf32>
    %6 = tpu.matmul %4, %5, %cst {dimension_numbers = #tpu.dot_dimension_numbers<[1], [0], [0], [1], [0, 0, 1, 1], [], []>} : vector<16x128xf32>, vector<128x128xf32>, vector<16x128xf32> -> vector<16x128xf32>
    %7 = arith.addf %3, %6 : vector<16x128xf32>
    %c0_6 = arith.constant 0 : index
    %c0_7 = arith.constant 0 : index
    %8 = vector.load %arg7[%c0_6, %c0_7] : memref<16x128xf32, #tpu.memory_space<vmem>>, vector<16x128xf32>
    tpu.vector_store %arg7[%c0_6, %c0_7], %7 {strides = array<i32>} : memref<16x128xf32, #tpu.memory_space<vmem>>, vector<16x128xf32>,
    %c0_i32_8 = arith.constant 0 : i32
    %9 = arith.cmpi eq, %arg2, %c0_i32_8 : i32
    %10 = arith.extui %9 : i1 to i32
    %c0_i32_9 = arith.constant 0 : i32
    %11 = arith.cmpi ne, %10, %c0_i32_9 : i32
    scf.if %11 {
      %c0_10 = arith.constant 0 : index
      %c0_11 = arith.constant 0 : index
      %12 = vector.load %arg7[%c0_10, %c0_11] : memref<16x128xf32, #tpu.memory_space<vmem>>, vector<16x128xf32>
      %c0_12 = arith.constant 0 : index
      %c0_13 = arith.constant 0 : index
      %13 = vector.load %arg5[%c0_12, %c0_13] : memref<1x128xf32, #tpu.memory_space<vmem>>, vector<1x128xf32>
      %14 = vector.broadcast %13 : vector<1x128xf32> to vector<16x128xf32>
      %15 = arith.addf %12, %14 : vector<16x128xf32>
      %c0_14 = arith.constant 0 : index
      %c0_15 = arith.constant 0 : index
      %16 = vector.load %arg6[%c0_14, %c0_15] : memref<16x128xf32, #tpu.memory_space<vmem>>, vector<16x128xf32>
      tpu.vector_store %arg6[%c0_14, %c0_15], %15 {strides = array<i32>} : memref<16x128xf32, #tpu.memory_space<vmem>>, vector<16x128xf32>,
    } else {
    }
    return
  }
  func.func @transform_0(%arg0: i32, %arg1: i32, %arg2: i32) -> (i32, i32) {
    %c0_i32 = arith.constant 0 : i32
    return %arg0, %arg2 : i32, i32
  }
  func.func @transform_1(%arg0: i32, %arg1: i32, %arg2: i32) -> (i32, i32) {
    %c0_i32 = arith.constant 0 : i32
    return %arg2, %arg1 : i32, i32
  }
  func.func @transform_2(%arg0: i32, %arg1: i32, %arg2: i32) -> (i32, i32) {
    %c0_i32 = arith.constant 0 : i32
    %c0_i32_0 = arith.constant 0 : i32
    return %c0_i32, %arg1 : i32, i32
  }
  func.func @transform_3(%arg0: i32, %arg1: i32, %arg2: i32) -> (i32, i32) {
    %c0_i32 = arith.constant 0 : i32
    return %arg0, %arg1 : i32, i32
  }
}

module attributes {stable_mosaic.version = 11 : i64} {
  func.func @_mha_kernel(%arg0: i32, %arg1: memref<1x8x128xf32, #tpu.memory_space<vmem>>, %arg2: memref<1x8x128xf32, #tpu.memory_space<vmem>>, %arg3: memref<1x8x128xf32, #tpu.memory_space<vmem>>, %arg4: memref<1x8x128xf32, #tpu.memory_space<vmem>>, %arg5: memref<1x4x8x8xf32, #tpu.memory_space<vmem>>) attributes {dimension_semantics = [#tpu.dimension_semantics<parallel>], iteration_bounds = array<i64: 2>, scalar_prefetch = 0 : i64, scratch_operands = 0 : i64, tpu.core_type = #tpu.core_type<tc>, window_params = [{transform_indices = @transform_0, window_bounds = array<i64: 1, 8, 128>}, {transform_indices = @transform_1, window_bounds = array<i64: 1, 8, 128>}, {transform_indices = @transform_2, window_bounds = array<i64: 1, 8, 128>}, {transform_indices = @transform_3, window_bounds = array<i64: 1, 8, 128>}, {transform_indices = @transform_4, window_bounds = array<i64: 1, 4, 8, 8>}]} {
    %c0 = arith.constant 0 : index
    %c0_0 = arith.constant 0 : index
    %c0_1 = arith.constant 0 : index
    %0 = vector.load %arg1[%c0, %c0_0, %c0_1] : memref<1x8x128xf32, #tpu.memory_space<vmem>>, vector<1x8x128xf32>
    %1 = vector.shape_cast %0 : vector<1x8x128xf32> to vector<8x128xf32>
    %c0_2 = arith.constant 0 : index
    %c0_3 = arith.constant 0 : index
    %c0_4 = arith.constant 0 : index
    %2 = vector.load %arg2[%c0_2, %c0_3, %c0_4] : memref<1x8x128xf32, #tpu.memory_space<vmem>>, vector<1x8x128xf32>
    %3 = vector.shape_cast %2 : vector<1x8x128xf32> to vector<8x128xf32>
    %c0_5 = arith.constant 0 : index
    %c0_6 = arith.constant 0 : index
    %c0_7 = arith.constant 0 : index
    %4 = vector.load %arg3[%c0_5, %c0_6, %c0_7] : memref<1x8x128xf32, #tpu.memory_space<vmem>>, vector<1x8x128xf32>
    %5 = vector.shape_cast %4 : vector<1x8x128xf32> to vector<8x128xf32>
    %cst = arith.constant 3.200000e+01 : f32
    %6 = math.sqrt %cst : f32
    %cst_8 = arith.constant 1.000000e+00 : f32
    %7 = arith.divf %cst_8, %6 : f32
    %8 = vector.extract_strided_slice %1 {offsets = [0, 0], sizes = [8, 32], strides = [1, 1]} : vector<8x128xf32> to vector<8x32xf32>
    %9 = vector.broadcast %7 : f32 to vector<8x32xf32>
    %10 = arith.mulf %8, %9 : vector<8x32xf32>
    %11 = vector.extract_strided_slice %3 {offsets = [0, 0], sizes = [8, 32], strides = [1, 1]} : vector<8x128xf32> to vector<8x32xf32>
    %12 = vector.extract_strided_slice %5 {offsets = [0, 0], sizes = [8, 32], strides = [1, 1]} : vector<8x128xf32> to vector<8x32xf32>
    %cst_9 = arith.constant dense<0.000000e+00> : vector<8x8xf32>
    %13 = tpu.matmul %10, %11, %cst_9 {dimension_numbers = #tpu.dot_dimension_numbers<[1], [1], [0], [0], [0, 0, 1, 0], [], []>} : vector<8x32xf32>, vector<8x32xf32>, vector<8x8xf32> -> vector<8x8xf32>
    %cst_10 = arith.constant dense<0xFF800000> : vector<8xf32>
    %14 = vector.multi_reduction <maximumf>, %13, %cst_10 [1] : vector<8x8xf32> to vector<8xf32>
    %15 = vector.shape_cast %14 : vector<8xf32> to vector<8x1xf32>
    %16 = vector.broadcast %15 : vector<8x1xf32> to vector<8x8xf32>
    %17 = arith.subf %13, %16 : vector<8x8xf32>
    %18 = math.exp %17 : vector<8x8xf32>
    %cst_11 = arith.constant dense<0.000000e+00> : vector<8xf32>
    %19 = vector.multi_reduction <add>, %18, %cst_11 [1] : vector<8x8xf32> to vector<8xf32>
    %20 = vector.shape_cast %19 : vector<8xf32> to vector<8x1xf32>
    %21 = tpu.reciprocal %20 {approx = true} : vector<8x1xf32> -> vector<8x1xf32>
    %22 = vector.broadcast %21 : vector<8x1xf32> to vector<8x8xf32>
    %23 = arith.mulf %18, %22 : vector<8x8xf32>
    %c0_12 = arith.constant 0 : index
    %c0_13 = arith.constant 0 : index
    %c0_14 = arith.constant 0 : index
    %c0_15 = arith.constant 0 : index
    %24 = vector.load %arg5[%c0_12, %c0_13, %c0_14, %c0_15] : memref<1x4x8x8xf32, #tpu.memory_space<vmem>>, vector<1x1x8x8xf32>
    %25 = vector.shape_cast %24 : vector<1x1x8x8xf32> to vector<8x8xf32>
    %26 = vector.shape_cast %23 : vector<8x8xf32> to vector<1x1x8x8xf32>
    tpu.vector_store %arg5[%c0_12, %c0_13, %c0_14, %c0_15], %26 {strides = array<i32>} : memref<1x4x8x8xf32, #tpu.memory_space<vmem>>, vector<1x1x8x8xf32>,
    %cst_16 = arith.constant dense<0.000000e+00> : vector<8x32xf32>
    %27 = tpu.matmul %23, %12, %cst_16 {dimension_numbers = #tpu.dot_dimension_numbers<[1], [0], [0], [1], [0, 0, 1, 1], [], []>} : vector<8x8xf32>, vector<8x32xf32>, vector<8x32xf32> -> vector<8x32xf32>
    %28 = vector.extract_strided_slice %1 {offsets = [0, 32], sizes = [8, 32], strides = [1, 1]} : vector<8x128xf32> to vector<8x32xf32>
    %29 = vector.broadcast %7 : f32 to vector<8x32xf32>
    %30 = arith.mulf %28, %29 : vector<8x32xf32>
    %31 = vector.extract_strided_slice %3 {offsets = [0, 32], sizes = [8, 32], strides = [1, 1]} : vector<8x128xf32> to vector<8x32xf32>
    %32 = vector.extract_strided_slice %5 {offsets = [0, 32], sizes = [8, 32], strides = [1, 1]} : vector<8x128xf32> to vector<8x32xf32>
    %cst_17 = arith.constant dense<0.000000e+00> : vector<8x8xf32>
    %33 = tpu.matmul %30, %31, %cst_17 {dimension_numbers = #tpu.dot_dimension_numbers<[1], [1], [0], [0], [0, 0, 1, 0], [], []>} : vector<8x32xf32>, vector<8x32xf32>, vector<8x8xf32> -> vector<8x8xf32>
    %cst_18 = arith.constant dense<0xFF800000> : vector<8xf32>
    %34 = vector.multi_reduction <maximumf>, %33, %cst_18 [1] : vector<8x8xf32> to vector<8xf32>
    %35 = vector.shape_cast %34 : vector<8xf32> to vector<8x1xf32>
    %36 = vector.broadcast %35 : vector<8x1xf32> to vector<8x8xf32>
    %37 = arith.subf %33, %36 : vector<8x8xf32>
    %38 = math.exp %37 : vector<8x8xf32>
    %cst_19 = arith.constant dense<0.000000e+00> : vector<8xf32>
    %39 = vector.multi_reduction <add>, %38, %cst_19 [1] : vector<8x8xf32> to vector<8xf32>
    %40 = vector.shape_cast %39 : vector<8xf32> to vector<8x1xf32>
    %41 = tpu.reciprocal %40 {approx = true} : vector<8x1xf32> -> vector<8x1xf32>
    %42 = vector.broadcast %41 : vector<8x1xf32> to vector<8x8xf32>
    %43 = arith.mulf %38, %42 : vector<8x8xf32>
    %c0_20 = arith.constant 0 : index
    %c1 = arith.constant 1 : index
    %c0_21 = arith.constant 0 : index
    %c0_22 = arith.constant 0 : index
    %44 = vector.load %arg5[%c0_20, %c1, %c0_21, %c0_22] : memref<1x4x8x8xf32, #tpu.memory_space<vmem>>, vector<1x1x8x8xf32>
    %45 = vector.shape_cast %44 : vector<1x1x8x8xf32> to vector<8x8xf32>
    %46 = vector.shape_cast %43 : vector<8x8xf32> to vector<1x1x8x8xf32>
    tpu.vector_store %arg5[%c0_20, %c1, %c0_21, %c0_22], %46 {strides = array<i32>} : memref<1x4x8x8xf32, #tpu.memory_space<vmem>>, vector<1x1x8x8xf32>,
    %cst_23 = arith.constant dense<0.000000e+00> : vector<8x32xf32>
    %47 = tpu.matmul %43, %32, %cst_23 {dimension_numbers = #tpu.dot_dimension_numbers<[1], [0], [0], [1], [0, 0, 1, 1], [], []>} : vector<8x8xf32>, vector<8x32xf32>, vector<8x32xf32> -> vector<8x32xf32>
    %48 = vector.extract_strided_slice %1 {offsets = [0, 64], sizes = [8, 32], strides = [1, 1]} : vector<8x128xf32> to vector<8x32xf32>
    %49 = vector.broadcast %7 : f32 to vector<8x32xf32>
    %50 = arith.mulf %48, %49 : vector<8x32xf32>
    %51 = vector.extract_strided_slice %3 {offsets = [0, 64], sizes = [8, 32], strides = [1, 1]} : vector<8x128xf32> to vector<8x32xf32>
    %52 = vector.extract_strided_slice %5 {offsets = [0, 64], sizes = [8, 32], strides = [1, 1]} : vector<8x128xf32> to vector<8x32xf32>
    %cst_24 = arith.constant dense<0.000000e+00> : vector<8x8xf32>
    %53 = tpu.matmul %50, %51, %cst_24 {dimension_numbers = #tpu.dot_dimension_numbers<[1], [1], [0], [0], [0, 0, 1, 0], [], []>} : vector<8x32xf32>, vector<8x32xf32>, vector<8x8xf32> -> vector<8x8xf32>
    %cst_25 = arith.constant dense<0xFF800000> : vector<8xf32>
    %54 = vector.multi_reduction <maximumf>, %53, %cst_25 [1] : vector<8x8xf32> to vector<8xf32>
    %55 = vector.shape_cast %54 : vector<8xf32> to vector<8x1xf32>
    %56 = vector.broadcast %55 : vector<8x1xf32> to vector<8x8xf32>
    %57 = arith.subf %53, %56 : vector<8x8xf32>
    %58 = math.exp %57 : vector<8x8xf32>
    %cst_26 = arith.constant dense<0.000000e+00> : vector<8xf32>
    %59 = vector.multi_reduction <add>, %58, %cst_26 [1] : vector<8x8xf32> to vector<8xf32>
    %60 = vector.shape_cast %59 : vector<8xf32> to vector<8x1xf32>
    %61 = tpu.reciprocal %60 {approx = true} : vector<8x1xf32> -> vector<8x1xf32>
    %62 = vector.broadcast %61 : vector<8x1xf32> to vector<8x8xf32>
    %63 = arith.mulf %58, %62 : vector<8x8xf32>
    %c0_27 = arith.constant 0 : index
    %c2 = arith.constant 2 : index
    %c0_28 = arith.constant 0 : index
    %c0_29 = arith.constant 0 : index
    %64 = vector.load %arg5[%c0_27, %c2, %c0_28, %c0_29] : memref<1x4x8x8xf32, #tpu.memory_space<vmem>>, vector<1x1x8x8xf32>
    %65 = vector.shape_cast %64 : vector<1x1x8x8xf32> to vector<8x8xf32>
    %66 = vector.shape_cast %63 : vector<8x8xf32> to vector<1x1x8x8xf32>
    tpu.vector_store %arg5[%c0_27, %c2, %c0_28, %c0_29], %66 {strides = array<i32>} : memref<1x4x8x8xf32, #tpu.memory_space<vmem>>, vector<1x1x8x8xf32>,
    %cst_30 = arith.constant dense<0.000000e+00> : vector<8x32xf32>
    %67 = tpu.matmul %63, %52, %cst_30 {dimension_numbers = #tpu.dot_dimension_numbers<[1], [0], [0], [1], [0, 0, 1, 1], [], []>} : vector<8x8xf32>, vector<8x32xf32>, vector<8x32xf32> -> vector<8x32xf32>
    %68 = vector.extract_strided_slice %1 {offsets = [0, 96], sizes = [8, 32], strides = [1, 1]} : vector<8x128xf32> to vector<8x32xf32>
    %69 = vector.broadcast %7 : f32 to vector<8x32xf32>
    %70 = arith.mulf %68, %69 : vector<8x32xf32>
    %71 = vector.extract_strided_slice %3 {offsets = [0, 96], sizes = [8, 32], strides = [1, 1]} : vector<8x128xf32> to vector<8x32xf32>
    %72 = vector.extract_strided_slice %5 {offsets = [0, 96], sizes = [8, 32], strides = [1, 1]} : vector<8x128xf32> to vector<8x32xf32>
    %cst_31 = arith.constant dense<0.000000e+00> : vector<8x8xf32>
    %73 = tpu.matmul %70, %71, %cst_31 {dimension_numbers = #tpu.dot_dimension_numbers<[1], [1], [0], [0], [0, 0, 1, 0], [], []>} : vector<8x32xf32>, vector<8x32xf32>, vector<8x8xf32> -> vector<8x8xf32>
    %cst_32 = arith.constant dense<0xFF800000> : vector<8xf32>
    %74 = vector.multi_reduction <maximumf>, %73, %cst_32 [1] : vector<8x8xf32> to vector<8xf32>
    %75 = vector.shape_cast %74 : vector<8xf32> to vector<8x1xf32>
    %76 = vector.broadcast %75 : vector<8x1xf32> to vector<8x8xf32>
    %77 = arith.subf %73, %76 : vector<8x8xf32>
    %78 = math.exp %77 : vector<8x8xf32>
    %cst_33 = arith.constant dense<0.000000e+00> : vector<8xf32>
    %79 = vector.multi_reduction <add>, %78, %cst_33 [1] : vector<8x8xf32> to vector<8xf32>
    %80 = vector.shape_cast %79 : vector<8xf32> to vector<8x1xf32>
    %81 = tpu.reciprocal %80 {approx = true} : vector<8x1xf32> -> vector<8x1xf32>
    %82 = vector.broadcast %81 : vector<8x1xf32> to vector<8x8xf32>
    %83 = arith.mulf %78, %82 : vector<8x8xf32>
    %c0_34 = arith.constant 0 : index
    %c3 = arith.constant 3 : index
    %c0_35 = arith.constant 0 : index
    %c0_36 = arith.constant 0 : index
    %84 = vector.load %arg5[%c0_34, %c3, %c0_35, %c0_36] : memref<1x4x8x8xf32, #tpu.memory_space<vmem>>, vector<1x1x8x8xf32>
    %85 = vector.shape_cast %84 : vector<1x1x8x8xf32> to vector<8x8xf32>
    %86 = vector.shape_cast %83 : vector<8x8xf32> to vector<1x1x8x8xf32>
    tpu.vector_store %arg5[%c0_34, %c3, %c0_35, %c0_36], %86 {strides = array<i32>} : memref<1x4x8x8xf32, #tpu.memory_space<vmem>>, vector<1x1x8x8xf32>,
    %cst_37 = arith.constant dense<0.000000e+00> : vector<8x32xf32>
    %87 = tpu.matmul %83, %72, %cst_37 {dimension_numbers = #tpu.dot_dimension_numbers<[1], [0], [0], [1], [0, 0, 1, 1], [], []>} : vector<8x8xf32>, vector<8x32xf32>, vector<8x32xf32> -> vector<8x32xf32>
    %88 = tpu.concatenate %27, %47, %67, %87 in 1 : vector<8x32xf32>, vector<8x32xf32>, vector<8x32xf32>, vector<8x32xf32> -> vector<8x128xf32>
    %c0_38 = arith.constant 0 : index
    %c0_39 = arith.constant 0 : index
    %c0_40 = arith.constant 0 : index
    %89 = vector.load %arg4[%c0_38, %c0_39, %c0_40] : memref<1x8x128xf32, #tpu.memory_space<vmem>>, vector<1x8x128xf32>
    %90 = vector.shape_cast %89 : vector<1x8x128xf32> to vector<8x128xf32>
    %91 = vector.shape_cast %88 : vector<8x128xf32> to vector<1x8x128xf32>
    tpu.vector_store %arg4[%c0_38, %c0_39, %c0_40], %91 {strides = array<i32>} : memref<1x8x128xf32, #tpu.memory_space<vmem>>, vector<1x8x128xf32>,
    return
  }
  func.func @transform_0(%arg0: i32) -> (i32, i32, i32) {
    %c0_i32 = arith.constant 0 : i32
    %c0_i32_0 = arith.constant 0 : i32
    %c0_i32_1 = arith.constant 0 : i32
    return %arg0, %c0_i32, %c0_i32_0 : i32, i32, i32
  }
  func.func @transform_1(%arg0: i32) -> (i32, i32, i32) {
    %c0_i32 = arith.constant 0 : i32
    %c0_i32_0 = arith.constant 0 : i32
    %c0_i32_1 = arith.constant 0 : i32
    return %arg0, %c0_i32, %c0_i32_0 : i32, i32, i32
  }
  func.func @transform_2(%arg0: i32) -> (i32, i32, i32) {
    %c0_i32 = arith.constant 0 : i32
    %c0_i32_0 = arith.constant 0 : i32
    %c0_i32_1 = arith.constant 0 : i32
    return %arg0, %c0_i32, %c0_i32_0 : i32, i32, i32
  }
  func.func @transform_3(%arg0: i32) -> (i32, i32, i32) {
    %c0_i32 = arith.constant 0 : i32
    %c0_i32_0 = arith.constant 0 : i32
    %c0_i32_1 = arith.constant 0 : i32
    return %arg0, %c0_i32, %c0_i32_0 : i32, i32, i32
  }
  func.func @transform_4(%arg0: i32) -> (i32, i32, i32, i32) {
    %c0_i32 = arith.constant 0 : i32
    %c0_i32_0 = arith.constant 0 : i32
    %c0_i32_1 = arith.constant 0 : i32
    %c0_i32_2 = arith.constant 0 : i32
    return %arg0, %c0_i32, %c0_i32_0, %c0_i32_1 : i32, i32, i32, i32
  }
}

</mosaic_0001>

<llo_original>
// kernel: multi_head_attention.3
$region0: #{multi_head_attention.3}
  #allocation0 [shape = 'u32[]', space=smem, size = 0x4, offset = 0x4, fixed_abs, tag = 'smem constant byte address 0x4 - core index']
  #allocation1 [shape = 'u32[144,128]{1,0:T(1,128)}', space=vmem, size = 0x12000, scoped, tag = 'internal scratch']
  #allocation2 [shape = 'f32[16,128]{1,0:T(8,128)}', space=vmem, size = 0x2000, scoped, tag = 'scratch operand']
  %s0 = inlined_call_operand.vmem [shape: f32[16,128], index: 0, kind: input, shape index: {}]
  %s1 = inlined_call_operand.vmem [shape: f32[128,384], index: 1, kind: input, shape index: {}]
  %s2 = inlined_call_operand.vmem [shape: f32[1,384], index: 2, kind: input, shape index: {}]
  %s3 = inlined_call_operand.vmem [shape: f32[16,384], index: 3, kind: output, shape index: {}]
  %s4 = sld [smem:[#allocation0]]
  $region125: #{multi_head_attention.3} parent=0
    _
  %s6 = ssub.s32 1, %s4
  %s7 = scalar_select 0, %s6, %s4
  $region1: #{multi_head_attention.3} parent=0
    #allocation3 [shape = 'u8[131072]{0}', space=vmem, size = 0x20000, scoped, tag = 'input window, operand 1']
    #allocation4 [shape = 'u8[16384]{0}', space=vmem, size = 0x4000, scoped, tag = 'output window, operand 0']
    loop: start=0, step=1, limit=5
    $region2: #{multi_head_attention.3} parent=1 // loop_pre_header
      _
    $region3: #{multi_head_attention.3} parent=1 // loop_header
      %s9 = sphi 0, %s13
      %p10 = scmp.ge.s32.totalorder %s9, 5
      %s16 = sphi 0, %s35
      %s17 = sphi 0, %s31
      %s18 = sphi 0, %s27
      %s19 = sphi 0, %s16
      %s20 = sphi 0, %s17
      %s21 = sphi 0, %s18
      %s22 = sphi 0, %s19
      %s23 = sphi 0, %s20
      %s24 = sphi 0, %s21
      %s40 = sphi 0, %s42
      %s43 = sphi 0, %s40
      %s44 = sphi 0, %s43
      %s60 = sphi 0, %s44
      %s68 = sphi 0, %s70
      %s71 = sphi 0, %s68
      %s72 = sphi 0, %s71
      %s88 = sphi 0, %s72
      %s94 = sphi 0, %s96
      %s97 = sphi 0, %s94
      %s98 = sphi 0, %s97
      %s114 = sphi 0, %s98
      %s122 = sphi 0, %s124
      %s125 = sphi 0, %s122
      %s126 = sphi 0, %s125
      %s142 = sphi 0, %s126
    $region4: #{multi_head_attention.3} parent=1 // loop_header_branch
      %12 = sbr.rel (%p10) target = $region8
    $region5: #{multi_head_attention.3} parent=1 // loop_body
      %s14 = ssub.s32 %s9, 1
      %s15 = ssub.s32 %s9, 2
      %s25 = sadd.s32 1, %s18
      %p26 = scmp.ge.s32.totalorder %s25, 1
      %s27 = scalar_select %p26, 0, %s25
      %s28 = sadd.s32 1, %s17
      %s29 = scalar_select %p26, %s28, %s17
      %p30 = scmp.ge.s32.totalorder %s29, 3
      %s31 = scalar_select %p30, 0, %s29
      %s32 = sadd.s32 1, %s16
      %s33 = scalar_select %p30, %s32, %s16
      %p34 = scmp.ge.s32.totalorder %s33, 1
      %s35 = scalar_select %p34, 0, %s33
      %s36 = ssub.s32 %s16, %s35
      %s37 = ssub.s32 %s18, %s27
      %s38 = sor.u32 %s36, %s37
      %p39 = scmp.eq.s32.totalorder %s38, 0
      %s41 = sadd.s32 %s40, 1
      %s42 = scalar_select %p39, %s40, %s41
      %p45 = pneg %p39
      %p46 = scmp.eq.s32.totalorder %s9, 2
      %p47 = por %p45, %p46
      %p48 = scmp.ne.s32.totalorder %s40, %s43
      %p49 = scmp.eq.s32.totalorder %s9, 0
      %p50 = por %p48, %p49
      %p51 = scmp.ne.s32.totalorder %s40, %s43
      %p52 = scmp.eq.s32.totalorder %s14, 2
      %p53 = por %p51, %p52
      %p54 = scmp.ne.s32.totalorder %s43, %s44
      %p55 = scmp.eq.s32.totalorder %s14, 0
      %p56 = por %p54, %p55
      %p57 = scmp.ne.s32.totalorder %s43, %s44
      %p58 = scmp.eq.s32.totalorder %s15, 2
      %p59 = por %p57, %p58
      %p61 = scmp.ne.s32.totalorder %s44, %s60
      %p62 = scmp.eq.s32.totalorder %s15, 0
      %p63 = por %p61, %p62
      %s64 = ssub.s32 %s18, %s27
      %s65 = ssub.s32 %s17, %s31
      %s66 = sor.u32 %s64, %s65
      %p67 = scmp.eq.s32.totalorder %s66, 0
      %s69 = sadd.s32 %s68, 1
      %s70 = scalar_select %p67, %s68, %s69
      %p73 = pneg %p67
      %p74 = scmp.eq.s32.totalorder %s9, 2
      %p75 = por %p73, %p74
      %p76 = scmp.ne.s32.totalorder %s68, %s71
      %p77 = scmp.eq.s32.totalorder %s9, 0
      %p78 = por %p76, %p77
      %p79 = scmp.ne.s32.totalorder %s68, %s71
      %p80 = scmp.eq.s32.totalorder %s14, 2
      %p81 = por %p79, %p80
      %p82 = scmp.ne.s32.totalorder %s71, %s72
      %p83 = scmp.eq.s32.totalorder %s14, 0
      %p84 = por %p82, %p83
      %p85 = scmp.ne.s32.totalorder %s71, %s72
      %p86 = scmp.eq.s32.totalorder %s15, 2
      %p87 = por %p85, %p86
      %p89 = scmp.ne.s32.totalorder %s72, %s88
      %p90 = scmp.eq.s32.totalorder %s15, 0
      %p91 = por %p89, %p90
      %s92 = ssub.s32 %s17, %s31
      %p93 = scmp.eq.s32.totalorder %s92, 0
      %s95 = sadd.s32 %s94, 1
      %s96 = scalar_select %p93, %s94, %s95
      %p99 = pneg %p93
      %p100 = scmp.eq.s32.totalorder %s9, 2
      %p101 = por %p99, %p100
      %p102 = scmp.ne.s32.totalorder %s94, %s97
      %p103 = scmp.eq.s32.totalorder %s9, 0
      %p104 = por %p102, %p103
      %p105 = scmp.ne.s32.totalorder %s94, %s97
      %p106 = scmp.eq.s32.totalorder %s14, 2
      %p107 = por %p105, %p106
      %p108 = scmp.ne.s32.totalorder %s97, %s98
      %p109 = scmp.eq.s32.totalorder %s14, 0
      %p110 = por %p108, %p109
      %p111 = scmp.ne.s32.totalorder %s97, %s98
      %p112 = scmp.eq.s32.totalorder %s15, 2
      %p113 = por %p111, %p112
      %p115 = scmp.ne.s32.totalorder %s98, %s114
      %p116 = scmp.eq.s32.totalorder %s15, 0
      %p117 = por %p115, %p116
      %s118 = ssub.s32 %s16, %s35
      %s119 = ssub.s32 %s17, %s31
      %s120 = sor.u32 %s118, %s119
      %p121 = scmp.eq.s32.totalorder %s120, 0
      %s123 = sadd.s32 %s122, 1
      %s124 = scalar_select %p121, %s122, %s123
      %p127 = pneg %p121
      %p128 = scmp.eq.s32.totalorder %s9, 2
      %p129 = por %p127, %p128
      %p130 = scmp.ne.s32.totalorder %s122, %s125
      %p131 = scmp.eq.s32.totalorder %s9, 0
      %p132 = por %p130, %p131
      %p133 = scmp.ne.s32.totalorder %s122, %s125
      %p134 = scmp.eq.s32.totalorder %s14, 2
      %p135 = por %p133, %p134
      %p136 = scmp.ne.s32.totalorder %s125, %s126
      %p137 = scmp.eq.s32.totalorder %s14, 0
      %p138 = por %p136, %p137
      %p139 = scmp.ne.s32.totalorder %s125, %s126
      %p140 = scmp.eq.s32.totalorder %s15, 2
      %p141 = por %p139, %p140
      %p143 = scmp.ne.s32.totalorder %s126, %s142
      %p144 = scmp.eq.s32.totalorder %s15, 0
      %p145 = por %p143, %p144
      %p146 = scmp.le.s32.totalorder 1, %s9
      %p147 = scmp.lt.s32.totalorder %s9, 4
      %p148 = pnand %p146, %p147
      %p149 = pneg %p148
      // Predicated region
      $region9: #{multi_head_attention.3} parent=5 // pred_check
        _
      $region10: #{multi_head_attention.3} parent=5 // pred_check_branch
        %151 = sbr.rel (%p148) target = $region12
      $region11: #{multi_head_attention.3} parent=5 // pred_region
        %s152 = ssub.s32 %s9, 1
        // Predicated region
        $region13: #{multi_head_attention.3} parent=11 // pred_check
          %p153 = pneg %p56
        $region14: #{multi_head_attention.3} parent=11 // pred_check_branch
          %155 = sbr.rel (%p153) target = $region16
        $region15: #{multi_head_attention.3} parent=11 // pred_region
          %s156 = smul.u32 2, %s19
          %p157 = scmp.lt.s32.totalorder %s156, 1
          %s158 = scalar_select %p157, %s156, 1
          %p159 = scmp.lt.s32.totalorder %s21, 0
          %s160 = scalar_select %p159, %s21, 0
          %s161 = sadd.s32 %s160, %s158
          %s162 = smul.addr %s161, 8
          %s163 = scalar_lea.vmem %s0, %s162
          %s164 = smul.u32 2, %s19
        $region16: #{multi_head_attention.3} parent=11 // pred_fallthru
          _
      $region12: #{multi_head_attention.3} parent=5 // pred_fallthru
        _
      %p165 = scmp.lt.s32.totalorder %s9, 3
      // Predicated region
      $region17: #{multi_head_attention.3} parent=5 // pred_check
        %p166 = pneg %p165
      $region18: #{multi_head_attention.3} parent=5 // pred_check_branch
        %168 = sbr.rel (%p166) target = $region20
      $region19: #{multi_head_attention.3} parent=5 // pred_region
        // Predicated region
        $region21: #{multi_head_attention.3} parent=19 // pred_check
          %p169 = pneg %p78
        $region22: #{multi_head_attention.3} parent=19 // pred_check_branch
          %171 = sbr.rel (%p169) target = $region24
        $region23: #{multi_head_attention.3} parent=19 // pred_region
          %s172 = sand.u32 %s68, 1
          %s173 = sand.u32 %s68, 1
          %s174 = smul.addr %s173, 128
          %s175 = scalar_lea.vmem [#allocation3], %s174
          %s176 = smul.u32 16, %s18
          %s177 = smul.addr %s176, 3
          %s178 = sadd.s32 %s17, %s177
          %s179 = smul.addr %s178, 8
          %s180 = scalar_lea.vmem %s1, %s179
          // Predicated region
          $region25: #{multi_head_attention.3} parent=23 // pred_check
            _
          $region26: #{multi_head_attention.3} parent=23 // pred_check_branch
            %182 = sbr.rel (0) target = $region28
          $region27: #{multi_head_attention.3} parent=23 // pred_region
            // Predicated region
            $region29: #{multi_head_attention.3} parent=27 // pred_check
              _
            $region30: #{multi_head_attention.3} parent=27 // pred_check_branch
              %184 = sbr.rel (0) target = $region32
            $region31: #{multi_head_attention.3} parent=27 // pred_region
              // Predicated region
              $region44: #{multi_head_attention.3} parent=31 // pred_check
                _
              $region45: #{multi_head_attention.3} parent=31 // pred_check_branch
                %230 = sbr.rel (0) target = $region47
              $region46: #{multi_head_attention.3} parent=31 // pred_region
                loop: start=0, step=1, limit=1
                $region48: #{multi_head_attention.3} parent=46 // loop_pre_header
                  _
                $region49: #{multi_head_attention.3} parent=46 // loop_header
                  %s232 = sphi 0, %s236
                  %p233 = scmp.ge.s32.totalorder %s232, 1
                  %s237 = sphi %s180, %s180
                  %s238 = sphi %s175, %s175
                $region50: #{multi_head_attention.3} parent=46 // loop_header_branch
                  %235 = sbr.rel (%p233) target = $region54
                $region51: #{multi_head_attention.3} parent=46 // loop_body
                  %v239 = vld [vmem:[%s237] sm:$0xff]
                  %240 = vst [vmem:[%s238] sm:$0xff] %v239
                  %v241 = vld [vmem:[%s237 + $0x18] sm:$0xff]
                  %242 = vst [vmem:[%s238 + $0x8] sm:$0xff] %v241
                  %v243 = vld [vmem:[%s237 + $0x30] sm:$0xff]
                  %244 = vst [vmem:[%s238 + $0x10] sm:$0xff] %v243
                  %v245 = vld [vmem:[%s237 + $0x48] sm:$0xff]
                  %246 = vst [vmem:[%s238 + $0x18] sm:$0xff] %v245
                  %v247 = vld [vmem:[%s237 + $0x60] sm:$0xff]
                  %248 = vst [vmem:[%s238 + $0x20] sm:$0xff] %v247
                  %v249 = vld [vmem:[%s237 + $0x78] sm:$0xff]
                  %250 = vst [vmem:[%s238 + $0x28] sm:$0xff] %v249
                  %v251 = vld [vmem:[%s237 + $0x90] sm:$0xff]
                  %252 = vst [vmem:[%s238 + $0x30] sm:$0xff] %v251
                  %v253 = vld [vmem:[%s237 + $0xa8] sm:$0xff]
                  %254 = vst [vmem:[%s238 + $0x38] sm:$0xff] %v253
                  %v255 = vld [vmem:[%s237 + $0xc0] sm:$0xff]
                  %256 = vst [vmem:[%s238 + $0x40] sm:$0xff] %v255
                  %v257 = vld [vmem:[%s237 + $0xd8] sm:$0xff]
                  %258 = vst [vmem:[%s238 + $0x48] sm:$0xff] %v257
                  %v259 = vld [vmem:[%s237 + $0xf0] sm:$0xff]
                  %260 = vst [vmem:[%s238 + $0x50] sm:$0xff] %v259
                  %v261 = vld [vmem:[%s237 + $0x108] sm:$0xff]
                  %262 = vst [vmem:[%s238 + $0x58] sm:$0xff] %v261
                  %v263 = vld [vmem:[%s237 + $0x120] sm:$0xff]
                  %264 = vst [vmem:[%s238 + $0x60] sm:$0xff] %v263
                  %v265 = vld [vmem:[%s237 + $0x138] sm:$0xff]
                  %266 = vst [vmem:[%s238 + $0x68] sm:$0xff] %v265
                  %v267 = vld [vmem:[%s237 + $0x150] sm:$0xff]
                  %268 = vst [vmem:[%s238 + $0x70] sm:$0xff] %v267
                  %v269 = vld [vmem:[%s237 + $0x168] sm:$0xff]
                  %270 = vst [vmem:[%s238 + $0x78] sm:$0xff] %v269
                $region52: #{multi_head_attention.3} parent=46 // loop_footer
                  %s236 = sadd.s32 1, %s232
                $region53: #{multi_head_attention.3} parent=46 // loop_footer_branch
                  %231 = sbr.rel target = $region49
                $region54: #{multi_head_attention.3} parent=46 // loop_exit
                  _
              $region47: #{multi_head_attention.3} parent=31 // pred_fallthru
                _
              // Predicated region
              $region55: #{multi_head_attention.3} parent=31 // pred_check
                _
              $region56: #{multi_head_attention.3} parent=31 // pred_check_branch
                %272 = sbr.rel target = $region58
              $region57: #{multi_head_attention.3} parent=31 // pred_region
                _
              $region58: #{multi_head_attention.3} parent=31 // pred_fallthru
                _
            $region32: #{multi_head_attention.3} parent=27 // pred_fallthru
              _
            // Predicated region
            $region33: #{multi_head_attention.3} parent=27 // pred_check
              _
            $region34: #{multi_head_attention.3} parent=27 // pred_check_branch
              %186 = sbr.rel target = $region36
            $region35: #{multi_head_attention.3} parent=27 // pred_region
              %s188 = ssub.s32 256, 1
              loop: start=0, step=1, limit=1
              $region37: #{multi_head_attention.3} parent=35 // loop_pre_header
                _
              $region38: #{multi_head_attention.3} parent=35 // loop_header
                %s190 = sphi 0, %s194
                %p191 = scmp.ge.s32.totalorder %s190, 1
                %s195 = sphi %s180, %s180
                %s196 = sphi %s175, %s175
              $region39: #{multi_head_attention.3} parent=35 // loop_header_branch
                %193 = sbr.rel (%p191) target = $region43
              $region40: #{multi_head_attention.3} parent=35 // loop_body
                %v197 = vld [vmem:[%s195] sm:%s188]
                %198 = vst [vmem:[%s196] sm:%s188] %v197
                %v199 = vld [vmem:[%s195 + $0x18] sm:%s188]
                %200 = vst [vmem:[%s196 + $0x8] sm:%s188] %v199
                %v201 = vld [vmem:[%s195 + $0x30] sm:%s188]
                %202 = vst [vmem:[%s196 + $0x10] sm:%s188] %v201
                %v203 = vld [vmem:[%s195 + $0x48] sm:%s188]
                %204 = vst [vmem:[%s196 + $0x18] sm:%s188] %v203
                %v205 = vld [vmem:[%s195 + $0x60] sm:%s188]
                %206 = vst [vmem:[%s196 + $0x20] sm:%s188] %v205
                %v207 = vld [vmem:[%s195 + $0x78] sm:%s188]
                %208 = vst [vmem:[%s196 + $0x28] sm:%s188] %v207
                %v209 = vld [vmem:[%s195 + $0x90] sm:%s188]
                %210 = vst [vmem:[%s196 + $0x30] sm:%s188] %v209
                %v211 = vld [vmem:[%s195 + $0xa8] sm:%s188]
                %212 = vst [vmem:[%s196 + $0x38] sm:%s188] %v211
                %v213 = vld [vmem:[%s195 + $0xc0] sm:%s188]
                %214 = vst [vmem:[%s196 + $0x40] sm:%s188] %v213
                %v215 = vld [vmem:[%s195 + $0xd8] sm:%s188]
                %216 = vst [vmem:[%s196 + $0x48] sm:%s188] %v215
                %v217 = vld [vmem:[%s195 + $0xf0] sm:%s188]
                %218 = vst [vmem:[%s196 + $0x50] sm:%s188] %v217
                %v219 = vld [vmem:[%s195 + $0x108] sm:%s188]
                %220 = vst [vmem:[%s196 + $0x58] sm:%s188] %v219
                %v221 = vld [vmem:[%s195 + $0x120] sm:%s188]
                %222 = vst [vmem:[%s196 + $0x60] sm:%s188] %v221
                %v223 = vld [vmem:[%s195 + $0x138] sm:%s188]
                %224 = vst [vmem:[%s196 + $0x68] sm:%s188] %v223
                %v225 = vld [vmem:[%s195 + $0x150] sm:%s188]
                %226 = vst [vmem:[%s196 + $0x70] sm:%s188] %v225
                %v227 = vld [vmem:[%s195 + $0x168] sm:%s188]
                %228 = vst [vmem:[%s196 + $0x78] sm:%s188] %v227
              $region41: #{multi_head_attention.3} parent=35 // loop_footer
                %s194 = sadd.s32 1, %s190
              $region42: #{multi_head_attention.3} parent=35 // loop_footer_branch
                %189 = sbr.rel target = $region38
              $region43: #{multi_head_attention.3} parent=35 // loop_exit
                _
            $region36: #{multi_head_attention.3} parent=27 // pred_fallthru
              _
          $region28: #{multi_head_attention.3} parent=23 // pred_fallthru
            _
          %273 = vnop
        $region24: #{multi_head_attention.3} parent=19 // pred_fallthru
          _
        // Predicated region
        $region59: #{multi_head_attention.3} parent=19 // pred_check
          %p274 = pneg %p104
        $region60: #{multi_head_attention.3} parent=19 // pred_check_branch
          %276 = sbr.rel (%p274) target = $region62
        $region61: #{multi_head_attention.3} parent=19 // pred_region
          %p277 = scmp.lt.s32.totalorder %s17, 2
          %s278 = scalar_select %p277, %s17, 2
          %s279 = scalar_lea.vmem %s2, %s278
        $region62: #{multi_head_attention.3} parent=19 // pred_fallthru
          _
      $region20: #{multi_head_attention.3} parent=5 // pred_fallthru
        _
      %p280 = scmp.le.s32.totalorder 1, %s9
      %p281 = scmp.lt.s32.totalorder %s9, 4
      %p282 = pnand %p280, %p281
      %p283 = pneg %p282
      // Predicated region
      $region63: #{multi_head_attention.3} parent=5 // pred_check
        _
      $region64: #{multi_head_attention.3} parent=5 // pred_check_branch
        %285 = sbr.rel (%p282) target = $region66
      $region65: #{multi_head_attention.3} parent=5 // pred_region
        %s286 = ssub.s32 %s9, 1
        %s287 = sand.u32 %s71, 1
        %s288 = sand.u32 %s71, 1
        %s289 = smul.addr %s288, 128
        %s290 = scalar_lea.vmem [#allocation3], %s289
        // Predicated region
        $region67: #{multi_head_attention.3} parent=65 // pred_check
          %p291 = pneg %p84
        $region68: #{multi_head_attention.3} parent=65 // pred_check_branch
          %293 = sbr.rel (%p291) target = $region70
        $region69: #{multi_head_attention.3} parent=65 // pred_region
          _
        $region70: #{multi_head_attention.3} parent=65 // pred_fallthru
          _
        %s294 = smul.u32 2, %s19
        %p295 = scmp.lt.s32.totalorder %s294, 1
        %s296 = scalar_select %p295, %s294, 1
        %p297 = scmp.lt.s32.totalorder %s21, 0
        %s298 = scalar_select %p297, %s21, 0
        %s299 = sadd.s32 %s298, %s296
        %s300 = smul.addr %s299, 8
        %s301 = scalar_lea.vmem %s0, %s300
        %p302 = pneg %p56
        %p303 = pneg %p53
        %s304 = sand.u32 %s71, 1
        %s305 = sand.u32 %s71, 1
        %s306 = smul.addr %s305, 128
        %s307 = scalar_lea.vmem [#allocation3], %s306
        %p308 = pneg %p84
        %p309 = pneg %p81
        %p310 = scmp.lt.s32.totalorder %s20, 2
        %s311 = scalar_select %p310, %s20, 2
        %s312 = scalar_lea.vmem %s2, %s311
        %p313 = pneg %p110
        %p314 = pneg %p107
        %p315 = pneg %p138
        %p316 = pneg %p135
        %s317 = sand.u32 %s125, 1
        %s318 = sand.u32 %s125, 1
        %s319 = smul.addr %s318, 16
        %s320 = scalar_lea.vmem [#allocation4], %s319
        %s321 = smul.u32 2, %s19
        %p322 = scmp.lt.s32.totalorder %s321, 1
        %s323 = scalar_select %p322, %s321, 1
        %p324 = scmp.lt.s32.totalorder %s21, 0
        %s325 = scalar_select %p324, %s21, 0
        %s326 = sadd.s32 %s325, %s323
        %s327 = smul.addr %s326, 8
        %s328 = scalar_lea.vmem %s0, %s327
        %s329 = smul.u32 2, %s19
        %s330 = smul.u32 16, %s21
        %p331 = scmp.lt.s32.totalorder %s20, 2
        %s332 = scalar_select %p331, %s20, 2
        %s333 = scalar_lea.vmem %s2, %s332
        %s334 = smul.u32 2, %s19
        %p335 = scmp.eq.s32.totalorder %s21, 0
        // Predicated region
        $region71: #{multi_head_attention.3} parent=65 // pred_check
          %p336 = pneg %p335
        $region72: #{multi_head_attention.3} parent=65 // pred_check_branch
          %338 = sbr.rel (%p336) target = $region74
        $region73: #{multi_head_attention.3} parent=65 // pred_region
          %339 = vst [vmem:[#allocation2] sm:$0xff] 0.0
          %340 = vst [vmem:[#allocation2 + $0x8] sm:$0xff] 0.0
        $region74: #{multi_head_attention.3} parent=65 // pred_fallthru
          _
        %v341 = vld [vmem:[#allocation2] sm:$0xff]
        %v342 = vld [vmem:[#allocation2 + $0x8] sm:$0xff]
        %v343 = vld [vmem:[%s328] sm:$0xff]
        %v344 = vld [vmem:[%s328 + $0x8] sm:$0xff]
        %v345 = vld [vmem:[%s290] sm:$0xff]
        %v346 = vld [vmem:[%s290 + $0x8] sm:$0xff]
        %v347 = vld [vmem:[%s290 + $0x10] sm:$0xff]
        %v348 = vld [vmem:[%s290 + $0x18] sm:$0xff]
        %v349 = vld [vmem:[%s290 + $0x20] sm:$0xff]
        %v350 = vld [vmem:[%s290 + $0x28] sm:$0xff]
        %v351 = vld [vmem:[%s290 + $0x30] sm:$0xff]
        %v352 = vld [vmem:[%s290 + $0x38] sm:$0xff]
        %v353 = vld [vmem:[%s290 + $0x40] sm:$0xff]
        %v354 = vld [vmem:[%s290 + $0x48] sm:$0xff]
        %v355 = vld [vmem:[%s290 + $0x50] sm:$0xff]
        %v356 = vld [vmem:[%s290 + $0x58] sm:$0xff]
        %v357 = vld [vmem:[%s290 + $0x60] sm:$0xff]
        %v358 = vld [vmem:[%s290 + $0x68] sm:$0xff]
        %v359 = vld [vmem:[%s290 + $0x70] sm:$0xff]
        %v360 = vld [vmem:[%s290 + $0x78] sm:$0xff]
        %361 = vmatprep.subr.mxu0 0.0
        %362 = vmatpush1.msra.mxu0 %v360
        %363 = vmatprep.subr.mxu0 0.0
        %364 = vmatpush1.msra.mxu0 %v359
        %365 = vmatprep.subr.mxu0 0.0
        %366 = vmatpush1.msra.mxu0 %v358
        %367 = vmatprep.subr.mxu0 0.0
        %368 = vmatpush1.msra.mxu0 %v357
        %369 = vmatprep.subr.mxu0 0.0
        %370 = vmatpush1.msra.mxu0 %v356
        %371 = vmatprep.subr.mxu0 0.0
        %372 = vmatpush1.msra.mxu0 %v355
        %373 = vmatprep.subr.mxu0 0.0
        %374 = vmatpush1.msra.mxu0 %v354
        %375 = vmatprep.subr.mxu0 0.0
        %376 = vmatpush1.msra.mxu0 %v353
        %377 = vmatprep.subr.mxu0 0.0
        %378 = vmatpush1.msra.mxu0 %v352
        %379 = vmatprep.subr.mxu0 0.0
        %380 = vmatpush1.msra.mxu0 %v351
        %381 = vmatprep.subr.mxu0 0.0
        %382 = vmatpush1.msra.mxu0 %v350
        %383 = vmatprep.subr.mxu0 0.0
        %384 = vmatpush1.msra.mxu0 %v349
        %385 = vmatprep.subr.mxu0 0.0
        %386 = vmatpush1.msra.mxu0 %v348
        %387 = vmatprep.subr.mxu0 0.0
        %388 = vmatpush1.msra.mxu0 %v347
        %389 = vmatprep.subr.mxu0 0.0
        %390 = vmatpush1.msra.mxu0 %v346
        %391 = vmatprep.subr.mxu0 0.0
        %392 = vmatpush1.msra.mxu0 %v345
        %393 = vmatprep.subr.mxu0 0.0
        %394 = vmatpush2.msra.mxu0 0.0
        %395 = vmatprep.subr.mxu0 0.0
        %396 = vmatpush2.msra.mxu0 0.0
        %397 = vmatprep.subr.mxu0 0.0
        %398 = vmatpush2.msra.mxu0 0.0
        %399 = vmatprep.subr.mxu0 0.0
        %400 = vmatpush2.msra.mxu0 0.0
        %401 = vmatprep.subr.mxu0 0.0
        %402 = vmatpush2.msra.mxu0 0.0
        %403 = vmatprep.subr.mxu0 0.0
        %404 = vmatpush2.msra.mxu0 0.0
        %405 = vmatprep.subr.mxu0 0.0
        %406 = vmatpush2.msra.mxu0 0.0
        %407 = vmatprep.subr.mxu0 0.0
        %408 = vmatpush2.msra.mxu0 0.0
        %409 = vmatprep.subr.mxu0 0.0
        %410 = vmatpush2.msra.mxu0 0.0
        %411 = vmatprep.subr.mxu0 0.0
        %412 = vmatpush2.msra.mxu0 0.0
        %413 = vmatprep.subr.mxu0 0.0
        %414 = vmatpush2.msra.mxu0 0.0
        %415 = vmatprep.subr.mxu0 0.0
        %416 = vmatpush2.msra.mxu0 0.0
        %417 = vmatprep.subr.mxu0 0.0
        %418 = vmatpush2.msra.mxu0 0.0
        %419 = vmatprep.subr.mxu0 0.0
        %420 = vmatpush2.msra.mxu0 0.0
        %421 = vmatprep.subr.mxu0 0.0
        %422 = vmatpush2.msra.mxu0 0.0
        %423 = vmatprep.subr.mxu0 0.0
        %424 = vmatpush2.msra.mxu0 0.0
        %425 = vmatprep.mubr.f32.mxu0 0.0
        %426 = vmatmul.mubr.f32.gmra.mxu0 %v343
        %v427 = vpop.f32.mrf.mxu0
        %v428 = vadd.f32 0.0, %v427
        %v429 = vpop.f32.mrf.mxu0
        %430 = vmatprep.mubr.f32.mxu0 0.0
        %431 = vmatmul.mubr.f32.gmra.mxu0 %v344
        %v432 = vpop.f32.mrf.mxu0
        %v433 = vadd.f32 0.0, %v432
        %v434 = vpop.f32.mrf.mxu0
        %435 = vdwg.mxu0
        %v436 = vadd.f32 %v341, %v428
        %v437 = vadd.f32 %v342, %v433
        %438 = vst [vmem:[#allocation2] sm:$0xff] %v436
        %439 = vst [vmem:[#allocation2 + $0x8] sm:$0xff] %v437
        // Predicated region
        $region75: #{multi_head_attention.3} parent=65 // pred_check
          %p440 = pneg %p335
        $region76: #{multi_head_attention.3} parent=65 // pred_check_branch
          %442 = sbr.rel (%p440) target = $region78
        $region77: #{multi_head_attention.3} parent=65 // pred_region
          %v443 = vld [vmem:[#allocation2] sm:$0xff]
          %v444 = vld [vmem:[#allocation2 + $0x8] sm:$0xff]
          %v445 = vld [vmem:[%s333] sm:$0x1]
          %v447 = vlaneseq
          %v448 = vshrl.u32 %v447, 7
          %v449 = vsub.s32 0, %v448
          %v450 = vrot.slane %v445, %v449
          %v452 = vadd.f32 %v443, %v450
          %v453 = vadd.f32 %v444, %v450
          %454 = vst [vmem:[%s320] sm:$0xff] %v452
          %455 = vst [vmem:[%s320 + $0x8] sm:$0xff] %v453
        $region78: #{multi_head_attention.3} parent=65 // pred_fallthru
          _
        %s456 = sand.u32 %s125, 1
        %s457 = sand.u32 %s125, 1
        %s458 = smul.addr %s457, 16
        %s459 = scalar_lea.vmem [#allocation4], %s458
        // Predicated region
        $region79: #{multi_head_attention.3} parent=65 // pred_check
          %p460 = pneg %p135
        $region80: #{multi_head_attention.3} parent=65 // pred_check_branch
          %462 = sbr.rel (%p460) target = $region82
        $region81: #{multi_head_attention.3} parent=65 // pred_region
          %s463 = smul.u32 2, %s19
          %s464 = smul.addr %s463, 3
          %s465 = sadd.s32 %s20, %s464
          %s466 = smul.addr %s465, 8
          %s467 = scalar_lea.vmem %s3, %s466
          // Predicated region
          $region83: #{multi_head_attention.3} parent=81 // pred_check
            _
          $region84: #{multi_head_attention.3} parent=81 // pred_check_branch
            %469 = sbr.rel (0) target = $region86
          $region85: #{multi_head_attention.3} parent=81 // pred_region
            // Predicated region
            $region87: #{multi_head_attention.3} parent=85 // pred_check
              _
            $region88: #{multi_head_attention.3} parent=85 // pred_check_branch
              %471 = sbr.rel (0) target = $region90
            $region89: #{multi_head_attention.3} parent=85 // pred_region
              // Predicated region
              $region102: #{multi_head_attention.3} parent=89 // pred_check
                _
              $region103: #{multi_head_attention.3} parent=89 // pred_check_branch
                %489 = sbr.rel (0) target = $region105
              $region104: #{multi_head_attention.3} parent=89 // pred_region
                loop: start=0, step=1, limit=1
                $region106: #{multi_head_attention.3} parent=104 // loop_pre_header
                  _
                $region107: #{multi_head_attention.3} parent=104 // loop_header
                  %s491 = sphi 0, %s495
                  %p492 = scmp.ge.s32.totalorder %s491, 1
                  %s496 = sphi %s459, %s459
                  %s497 = sphi %s467, %s467
                $region108: #{multi_head_attention.3} parent=104 // loop_header_branch
                  %494 = sbr.rel (%p492) target = $region112
                $region109: #{multi_head_attention.3} parent=104 // loop_body
                  %v498 = vld [vmem:[%s496] sm:$0xff]
                  %499 = vst [vmem:[%s497] sm:$0xff] %v498
                  %v500 = vld [vmem:[%s496 + $0x8] sm:$0xff]
                  %501 = vst [vmem:[%s497 + $0x18] sm:$0xff] %v500
                $region110: #{multi_head_attention.3} parent=104 // loop_footer
                  %s495 = sadd.s32 1, %s491
                $region111: #{multi_head_attention.3} parent=104 // loop_footer_branch
                  %490 = sbr.rel target = $region107
                $region112: #{multi_head_attention.3} parent=104 // loop_exit
                  _
              $region105: #{multi_head_attention.3} parent=89 // pred_fallthru
                _
              // Predicated region
              $region113: #{multi_head_attention.3} parent=89 // pred_check
                _
              $region114: #{multi_head_attention.3} parent=89 // pred_check_branch
                %503 = sbr.rel target = $region116
              $region115: #{multi_head_attention.3} parent=89 // pred_region
                _
              $region116: #{multi_head_attention.3} parent=89 // pred_fallthru
                _
            $region90: #{multi_head_attention.3} parent=85 // pred_fallthru
              _
            // Predicated region
            $region91: #{multi_head_attention.3} parent=85 // pred_check
              _
            $region92: #{multi_head_attention.3} parent=85 // pred_check_branch
              %473 = sbr.rel target = $region94
            $region93: #{multi_head_attention.3} parent=85 // pred_region
              %s475 = ssub.s32 256, 1
              loop: start=0, step=1, limit=1
              $region95: #{multi_head_attention.3} parent=93 // loop_pre_header
                _
              $region96: #{multi_head_attention.3} parent=93 // loop_header
                %s477 = sphi 0, %s481
                %p478 = scmp.ge.s32.totalorder %s477, 1
                %s482 = sphi %s459, %s459
                %s483 = sphi %s467, %s467
              $region97: #{multi_head_attention.3} parent=93 // loop_header_branch
                %480 = sbr.rel (%p478) target = $region101
              $region98: #{multi_head_attention.3} parent=93 // loop_body
                %v484 = vld [vmem:[%s482] sm:%s475]
                %485 = vst [vmem:[%s483] sm:%s475] %v484
                %v486 = vld [vmem:[%s482 + $0x8] sm:%s475]
                %487 = vst [vmem:[%s483 + $0x18] sm:%s475] %v486
              $region99: #{multi_head_attention.3} parent=93 // loop_footer
                %s481 = sadd.s32 1, %s477
              $region100: #{multi_head_attention.3} parent=93 // loop_footer_branch
                %476 = sbr.rel target = $region96
              $region101: #{multi_head_attention.3} parent=93 // loop_exit
                _
            $region94: #{multi_head_attention.3} parent=85 // pred_fallthru
              _
          $region86: #{multi_head_attention.3} parent=81 // pred_fallthru
            _
          %504 = vnop
        $region82: #{multi_head_attention.3} parent=65 // pred_fallthru
          _
      $region66: #{multi_head_attention.3} parent=5 // pred_fallthru
        _
      %p505 = scmp.le.s32.totalorder 2, %s9
      // Predicated region
      $region117: #{multi_head_attention.3} parent=5 // pred_check
        %p506 = pneg %p505
      $region118: #{multi_head_attention.3} parent=5 // pred_check_branch
        %508 = sbr.rel (%p506) target = $region120
      $region119: #{multi_head_attention.3} parent=5 // pred_region
        %s509 = ssub.s32 %s9, 2
        // Predicated region
        $region121: #{multi_head_attention.3} parent=119 // pred_check
          %p510 = pneg %p141
        $region122: #{multi_head_attention.3} parent=119 // pred_check_branch
          %512 = sbr.rel (%p510) target = $region124
        $region123: #{multi_head_attention.3} parent=119 // pred_region
          %s513 = sand.u32 %s126, 1
          %s514 = sand.u32 %s126, 1
          %s515 = smul.addr %s514, 16
          %s516 = scalar_lea.vmem [#allocation4], %s515
        $region124: #{multi_head_attention.3} parent=119 // pred_fallthru
          _
      $region120: #{multi_head_attention.3} parent=5 // pred_fallthru
        _
    $region6: #{multi_head_attention.3} parent=1 // loop_footer
      %s13 = sadd.s32 1, %s9
    $region7: #{multi_head_attention.3} parent=1 // loop_footer_branch
      %8 = sbr.rel target = $region3
    $region8: #{multi_head_attention.3} parent=1 // loop_exit
      _

// kernel: multi_head_attention.5
$region0: #{multi_head_attention.5}
  #allocation0 [shape = 'u32[]', space=smem, size = 0x4, offset = 0x4, fixed_abs, tag = 'smem constant byte address 0x4 - core index']
  #allocation1 [shape = 'u32[144,128]{1,0:T(1,128)}', space=vmem, size = 0x12000, scoped, tag = 'internal scratch']
  #allocation2 [shape = 'f32[16,128]{1,0:T(8,128)}', space=vmem, size = 0x2000, scoped, tag = 'scratch operand']
  %s0 = inlined_call_operand.vmem [shape: f32[16,128], index: 0, kind: input, shape index: {}]
  %s1 = inlined_call_operand.vmem [shape: f32[128,128], index: 1, kind: input, shape index: {}]
  %s2 = inlined_call_operand.vmem [shape: f32[1,128], index: 2, kind: input, shape index: {}]
  %s3 = inlined_call_operand.hbm [shape: f32[16,128], index: 3, kind: output, shape index: {}]
  %s4 = sld [smem:[#allocation0]]
  $region30: #{multi_head_attention.5} parent=0
    _
  %s6 = ssub.s32 1, %s4
  %s7 = scalar_select 0, %s6, %s4
  $region1: #{multi_head_attention.5} parent=0
    #allocation3 [shape = 'u8[8192]{0}', space=vmem, size = 0x2000, scoped, tag = 'output window, operand 0, single buffered']
    #allocation4 [shape = 's32[1]{0}', space=sflag, size = 0x4, scoped, tag = 'scoped memory for multi_head_attention.5']
    %8 = vsyncpa [#allocation4], 0
    // Predicated region
    $region2: #{multi_head_attention.5} parent=1 // pred_check
      _
    $region3: #{multi_head_attention.5} parent=1 // pred_check_branch
      %10 = sbr.rel (0) target = $region5
    $region4: #{multi_head_attention.5} parent=1 // pred_region
      _
    $region5: #{multi_head_attention.5} parent=1 // pred_fallthru
      _
    // Predicated region
    $region6: #{multi_head_attention.5} parent=1 // pred_check
      _
    $region7: #{multi_head_attention.5} parent=1 // pred_check_branch
      %12 = sbr.rel (0) target = $region9
    $region8: #{multi_head_attention.5} parent=1 // pred_region
      _
    $region9: #{multi_head_attention.5} parent=1 // pred_fallthru
      _
    // Predicated region
    $region10: #{multi_head_attention.5} parent=1 // pred_check
      _
    $region11: #{multi_head_attention.5} parent=1 // pred_check_branch
      %14 = sbr.rel (0) target = $region13
    $region12: #{multi_head_attention.5} parent=1 // pred_region
      _
    $region13: #{multi_head_attention.5} parent=1 // pred_fallthru
      _
    %p15 = scmp.eq.s32.totalorder 0, 0
    // Predicated region
    $region14: #{multi_head_attention.5} parent=1 // pred_check
      %p16 = pneg %p15
    $region15: #{multi_head_attention.5} parent=1 // pred_check_branch
      %18 = sbr.rel (%p16) target = $region17
    $region16: #{multi_head_attention.5} parent=1 // pred_region
      %19 = vst [vmem:[#allocation2] sm:$0xff] 0.0
      %20 = vst [vmem:[#allocation2 + $0x8] sm:$0xff] 0.0
    $region17: #{multi_head_attention.5} parent=1 // pred_fallthru
      _
    %v21 = vld [vmem:[#allocation2] sm:$0xff]
    %v22 = vld [vmem:[#allocation2 + $0x8] sm:$0xff]
    %v23 = vld [vmem:[%s0] sm:$0xff]
    %v24 = vld [vmem:[%s0 + $0x8] sm:$0xff]
    %v25 = vld [vmem:[%s1] sm:$0xff]
    %v26 = vld [vmem:[%s1 + $0x8] sm:$0xff]
    %v27 = vld [vmem:[%s1 + $0x10] sm:$0xff]
    %v28 = vld [vmem:[%s1 + $0x18] sm:$0xff]
    %v29 = vld [vmem:[%s1 + $0x20] sm:$0xff]
    %v30 = vld [vmem:[%s1 + $0x28] sm:$0xff]
    %v31 = vld [vmem:[%s1 + $0x30] sm:$0xff]
    %v32 = vld [vmem:[%s1 + $0x38] sm:$0xff]
    %v33 = vld [vmem:[%s1 + $0x40] sm:$0xff]
    %v34 = vld [vmem:[%s1 + $0x48] sm:$0xff]
    %v35 = vld [vmem:[%s1 + $0x50] sm:$0xff]
    %v36 = vld [vmem:[%s1 + $0x58] sm:$0xff]
    %v37 = vld [vmem:[%s1 + $0x60] sm:$0xff]
    %v38 = vld [vmem:[%s1 + $0x68] sm:$0xff]
    %v39 = vld [vmem:[%s1 + $0x70] sm:$0xff]
    %v40 = vld [vmem:[%s1 + $0x78] sm:$0xff]
    %41 = vmatprep.subr.mxu0 0.0
    %42 = vmatpush1.msra.mxu0 %v40
    %43 = vmatprep.subr.mxu0 0.0
    %44 = vmatpush1.msra.mxu0 %v39
    %45 = vmatprep.subr.mxu0 0.0
    %46 = vmatpush1.msra.mxu0 %v38
    %47 = vmatprep.subr.mxu0 0.0
    %48 = vmatpush1.msra.mxu0 %v37
    %49 = vmatprep.subr.mxu0 0.0
    %50 = vmatpush1.msra.mxu0 %v36
    %51 = vmatprep.subr.mxu0 0.0
    %52 = vmatpush1.msra.mxu0 %v35
    %53 = vmatprep.subr.mxu0 0.0
    %54 = vmatpush1.msra.mxu0 %v34
    %55 = vmatprep.subr.mxu0 0.0
    %56 = vmatpush1.msra.mxu0 %v33
    %57 = vmatprep.subr.mxu0 0.0
    %58 = vmatpush1.msra.mxu0 %v32
    %59 = vmatprep.subr.mxu0 0.0
    %60 = vmatpush1.msra.mxu0 %v31
    %61 = vmatprep.subr.mxu0 0.0
    %62 = vmatpush1.msra.mxu0 %v30
    %63 = vmatprep.subr.mxu0 0.0
    %64 = vmatpush1.msra.mxu0 %v29
    %65 = vmatprep.subr.mxu0 0.0
    %66 = vmatpush1.msra.mxu0 %v28
    %67 = vmatprep.subr.mxu0 0.0
    %68 = vmatpush1.msra.mxu0 %v27
    %69 = vmatprep.subr.mxu0 0.0
    %70 = vmatpush1.msra.mxu0 %v26
    %71 = vmatprep.subr.mxu0 0.0
    %72 = vmatpush1.msra.mxu0 %v25
    %73 = vmatprep.subr.mxu0 0.0
    %74 = vmatpush2.msra.mxu0 0.0
    %75 = vmatprep.subr.mxu0 0.0
    %76 = vmatpush2.msra.mxu0 0.0
    %77 = vmatprep.subr.mxu0 0.0
    %78 = vmatpush2.msra.mxu0 0.0
    %79 = vmatprep.subr.mxu0 0.0
    %80 = vmatpush2.msra.mxu0 0.0
    %81 = vmatprep.subr.mxu0 0.0
    %82 = vmatpush2.msra.mxu0 0.0
    %83 = vmatprep.subr.mxu0 0.0
    %84 = vmatpush2.msra.mxu0 0.0
    %85 = vmatprep.subr.mxu0 0.0
    %86 = vmatpush2.msra.mxu0 0.0
    %87 = vmatprep.subr.mxu0 0.0
    %88 = vmatpush2.msra.mxu0 0.0
    %89 = vmatprep.subr.mxu0 0.0
    %90 = vmatpush2.msra.mxu0 0.0
    %91 = vmatprep.subr.mxu0 0.0
    %92 = vmatpush2.msra.mxu0 0.0
    %93 = vmatprep.subr.mxu0 0.0
    %94 = vmatpush2.msra.mxu0 0.0
    %95 = vmatprep.subr.mxu0 0.0
    %96 = vmatpush2.msra.mxu0 0.0
    %97 = vmatprep.subr.mxu0 0.0
    %98 = vmatpush2.msra.mxu0 0.0
    %99 = vmatprep.subr.mxu0 0.0
    %100 = vmatpush2.msra.mxu0 0.0
    %101 = vmatprep.subr.mxu0 0.0
    %102 = vmatpush2.msra.mxu0 0.0
    %103 = vmatprep.subr.mxu0 0.0
    %104 = vmatpush2.msra.mxu0 0.0
    %105 = vmatprep.mubr.f32.mxu0 0.0
    %106 = vmatmul.mubr.f32.gmra.mxu0 %v23
    %v107 = vpop.f32.mrf.mxu0
    %v108 = vadd.f32 0.0, %v107
    %v109 = vpop.f32.mrf.mxu0
    %110 = vmatprep.mubr.f32.mxu0 0.0
    %111 = vmatmul.mubr.f32.gmra.mxu0 %v24
    %v112 = vpop.f32.mrf.mxu0
    %v113 = vadd.f32 0.0, %v112
    %v114 = vpop.f32.mrf.mxu0
    %115 = vdwg.mxu0
    %v116 = vadd.f32 %v21, %v108
    %v117 = vadd.f32 %v22, %v113
    %118 = vst [vmem:[#allocation2] sm:$0xff] %v116
    %119 = vst [vmem:[#allocation2 + $0x8] sm:$0xff] %v117
    // Predicated region
    $region18: #{multi_head_attention.5} parent=1 // pred_check
      %p120 = pneg %p15
    $region19: #{multi_head_attention.5} parent=1 // pred_check_branch
      %122 = sbr.rel (%p120) target = $region21
    $region20: #{multi_head_attention.5} parent=1 // pred_region
      %v123 = vld [vmem:[#allocation2] sm:$0xff]
      %v124 = vld [vmem:[#allocation2 + $0x8] sm:$0xff]
      %v125 = vld [vmem:[%s2] sm:$0x1]
      %v127 = vlaneseq
      %v128 = vshrl.u32 %v127, 7
      %v129 = vsub.s32 0, %v128
      %v130 = vrot.slane %v125, %v129
      %v132 = vadd.f32 %v123, %v130
      %v133 = vadd.f32 %v124, %v130
      %134 = vst [vmem:[#allocation3] sm:$0xff] %v132
      %135 = vst [vmem:[#allocation3 + $0x8] sm:$0xff] %v133
    $region21: #{multi_head_attention.5} parent=1 // pred_fallthru
      _
    // Predicated region
    $region22: #{multi_head_attention.5} parent=1 // pred_check
      _
    $region23: #{multi_head_attention.5} parent=1 // pred_check_branch
      %137 = sbr.rel (0) target = $region25
    $region24: #{multi_head_attention.5} parent=1 // pred_region
      %s139 = ssub.s32 256, 256
      %140 = vsyncadd [#allocation4], %s139
      %s141 = sshll.u32 [#allocation3], 4
      %s142 = int_to_ptr.vmem [resolvable:$true] %s141
      %147 = dma.vmem_to_hbm [thread:$0]  %s142, 256, %s3, [#allocation4], 128, 128, 8
    $region25: #{multi_head_attention.5} parent=1 // pred_fallthru
      _
    // Predicated region
    $region26: #{multi_head_attention.5} parent=1 // pred_check
      _
    $region27: #{multi_head_attention.5} parent=1 // pred_check_branch
      %149 = sbr.rel (0) target = $region29
    $region28: #{multi_head_attention.5} parent=1 // pred_region
      %150 = dma.done [#allocation4], 256
    $region29: #{multi_head_attention.5} parent=1 // pred_fallthru
      _
    %151 = vsyncpa [#allocation4], 1

// kernel: multi_head_attention.4
$region0: #{multi_head_attention.4}
  #allocation0 [shape = 'u32[]', space=smem, size = 0x4, offset = 0x4, fixed_abs, tag = 'smem constant byte address 0x4 - core index']
  #allocation1 [shape = 'u32[144,128]{1,0:T(1,128)}', space=vmem, size = 0x12000, scoped, tag = 'internal scratch']
  %s0 = inlined_call_operand.vmem [shape: f32[2,8,128], index: 0, kind: input, shape index: {}]
  %s1 = inlined_call_operand.vmem [shape: f32[2,8,128], index: 1, kind: input, shape index: {}]
  %s2 = inlined_call_operand.vmem [shape: f32[2,8,128], index: 2, kind: input, shape index: {}]
  %s3 = inlined_call_operand.vmem [shape: f32[2,8,128], index: 3, kind: output, shape index: {0}]
  %s4 = inlined_call_operand.hbm [shape: f32[2,4,8,8], index: 4, kind: output, shape index: {1}]
  %5 = xla_tuple %s3, %s4
  %s6 = sld [smem:[#allocation0]]
  $region53: #{multi_head_attention.4} parent=0
    _
  %s8 = ssub.s32 1, %s6
  %s9 = scalar_select 0, %s8, %s6
  $region1: #{multi_head_attention.4} parent=0
    #allocation2 [shape = 'u8[32768]{0}', space=vmem, size = 0x8000, scoped, tag = 'output window, operand 1']
    #allocation3 [shape = 's32[2]{0}', space=sflag, size = 0x8, scoped, tag = 'scoped memory for multi_head_attention.4']
    %10 = vsyncpa [#allocation3], 0
    %s11 = scalar_lea.sflag [#allocation3], 1
    %12 = vsyncpa %s11, 0
    loop: start=0, step=1, limit=4
    $region2: #{multi_head_attention.4} parent=1 // loop_pre_header
      _
    $region3: #{multi_head_attention.4} parent=1 // loop_header
      %s14 = sphi 0, %s18
      %p15 = scmp.ge.s32.totalorder %s14, 4
      %s24 = sphi 0, %s26
      %s27 = sphi 0, %s24
      %s28 = sphi 0, %s27
      %s44 = sphi 0, %s28
      %s50 = sphi 0, %s52
      %s53 = sphi 0, %s50
      %s54 = sphi 0, %s53
      %s70 = sphi 0, %s54
      %s76 = sphi 0, %s78
      %s79 = sphi 0, %s76
      %s80 = sphi 0, %s79
      %s96 = sphi 0, %s80
      %s102 = sphi 0, %s104
      %s105 = sphi 0, %s102
      %s106 = sphi 0, %s105
      %s122 = sphi 0, %s106
      %s128 = sphi 0, %s130
      %s131 = sphi 0, %s128
      %s132 = sphi 0, %s131
      %s148 = sphi 0, %s132
    $region4: #{multi_head_attention.4} parent=1 // loop_header_branch
      %17 = sbr.rel (%p15) target = $region8
    $region5: #{multi_head_attention.4} parent=1 // loop_body
      %s19 = ssub.s32 %s14, 1
      %s20 = ssub.s32 %s14, 2
      %s21 = sadd.s32 %s14, 1
      %s22 = ssub.s32 %s14, %s21
      %p23 = scmp.eq.s32.totalorder %s22, 0
      %s25 = sadd.s32 %s24, 1
      %s26 = scalar_select %p23, %s24, %s25
      %p29 = pneg %p23
      %p30 = scmp.eq.s32.totalorder %s14, 1
      %p31 = por %p29, %p30
      %p32 = scmp.ne.s32.totalorder %s24, %s27
      %p33 = scmp.eq.s32.totalorder %s14, 0
      %p34 = por %p32, %p33
      %p35 = scmp.ne.s32.totalorder %s24, %s27
      %p36 = scmp.eq.s32.totalorder %s19, 1
      %p37 = por %p35, %p36
      %p38 = scmp.ne.s32.totalorder %s27, %s28
      %p39 = scmp.eq.s32.totalorder %s19, 0
      %p40 = por %p38, %p39
      %p41 = scmp.ne.s32.totalorder %s27, %s28
      %p42 = scmp.eq.s32.totalorder %s20, 1
      %p43 = por %p41, %p42
      %p45 = scmp.ne.s32.totalorder %s28, %s44
      %p46 = scmp.eq.s32.totalorder %s20, 0
      %p47 = por %p45, %p46
      %s48 = ssub.s32 %s14, %s21
      %p49 = scmp.eq.s32.totalorder %s48, 0
      %s51 = sadd.s32 %s50, 1
      %s52 = scalar_select %p49, %s50, %s51
      %p55 = pneg %p49
      %p56 = scmp.eq.s32.totalorder %s14, 1
      %p57 = por %p55, %p56
      %p58 = scmp.ne.s32.totalorder %s50, %s53
      %p59 = scmp.eq.s32.totalorder %s14, 0
      %p60 = por %p58, %p59
      %p61 = scmp.ne.s32.totalorder %s50, %s53
      %p62 = scmp.eq.s32.totalorder %s19, 1
      %p63 = por %p61, %p62
      %p64 = scmp.ne.s32.totalorder %s53, %s54
      %p65 = scmp.eq.s32.totalorder %s19, 0
      %p66 = por %p64, %p65
      %p67 = scmp.ne.s32.totalorder %s53, %s54
      %p68 = scmp.eq.s32.totalorder %s20, 1
      %p69 = por %p67, %p68
      %p71 = scmp.ne.s32.totalorder %s54, %s70
      %p72 = scmp.eq.s32.totalorder %s20, 0
      %p73 = por %p71, %p72
      %s74 = ssub.s32 %s14, %s21
      %p75 = scmp.eq.s32.totalorder %s74, 0
      %s77 = sadd.s32 %s76, 1
      %s78 = scalar_select %p75, %s76, %s77
      %p81 = pneg %p75
      %p82 = scmp.eq.s32.totalorder %s14, 1
      %p83 = por %p81, %p82
      %p84 = scmp.ne.s32.totalorder %s76, %s79
      %p85 = scmp.eq.s32.totalorder %s14, 0
      %p86 = por %p84, %p85
      %p87 = scmp.ne.s32.totalorder %s76, %s79
      %p88 = scmp.eq.s32.totalorder %s19, 1
      %p89 = por %p87, %p88
      %p90 = scmp.ne.s32.totalorder %s79, %s80
      %p91 = scmp.eq.s32.totalorder %s19, 0
      %p92 = por %p90, %p91
      %p93 = scmp.ne.s32.totalorder %s79, %s80
      %p94 = scmp.eq.s32.totalorder %s20, 1
      %p95 = por %p93, %p94
      %p97 = scmp.ne.s32.totalorder %s80, %s96
      %p98 = scmp.eq.s32.totalorder %s20, 0
      %p99 = por %p97, %p98
      %s100 = ssub.s32 %s14, %s21
      %p101 = scmp.eq.s32.totalorder %s100, 0
      %s103 = sadd.s32 %s102, 1
      %s104 = scalar_select %p101, %s102, %s103
      %p107 = pneg %p101
      %p108 = scmp.eq.s32.totalorder %s14, 1
      %p109 = por %p107, %p108
      %p110 = scmp.ne.s32.totalorder %s102, %s105
      %p111 = scmp.eq.s32.totalorder %s14, 0
      %p112 = por %p110, %p111
      %p113 = scmp.ne.s32.totalorder %s102, %s105
      %p114 = scmp.eq.s32.totalorder %s19, 1
      %p115 = por %p113, %p114
      %p116 = scmp.ne.s32.totalorder %s105, %s106
      %p117 = scmp.eq.s32.totalorder %s19, 0
      %p118 = por %p116, %p117
      %p119 = scmp.ne.s32.totalorder %s105, %s106
      %p120 = scmp.eq.s32.totalorder %s20, 1
      %p121 = por %p119, %p120
      %p123 = scmp.ne.s32.totalorder %s106, %s122
      %p124 = scmp.eq.s32.totalorder %s20, 0
      %p125 = por %p123, %p124
      %s126 = ssub.s32 %s14, %s21
      %p127 = scmp.eq.s32.totalorder %s126, 0
      %s129 = sadd.s32 %s128, 1
      %s130 = scalar_select %p127, %s128, %s129
      %p133 = pneg %p127
      %p134 = scmp.eq.s32.totalorder %s14, 1
      %p135 = por %p133, %p134
      %p136 = scmp.ne.s32.totalorder %s128, %s131
      %p137 = scmp.eq.s32.totalorder %s14, 0
      %p138 = por %p136, %p137
      %p139 = scmp.ne.s32.totalorder %s128, %s131
      %p140 = scmp.eq.s32.totalorder %s19, 1
      %p141 = por %p139, %p140
      %p142 = scmp.ne.s32.totalorder %s131, %s132
      %p143 = scmp.eq.s32.totalorder %s19, 0
      %p144 = por %p142, %p143
      %p145 = scmp.ne.s32.totalorder %s131, %s132
      %p146 = scmp.eq.s32.totalorder %s20, 1
      %p147 = por %p145, %p146
      %p149 = scmp.ne.s32.totalorder %s132, %s148
      %p150 = scmp.eq.s32.totalorder %s20, 0
      %p151 = por %p149, %p150
      %p152 = scmp.le.s32.totalorder 1, %s14
      %p153 = scmp.lt.s32.totalorder %s14, 3
      %p154 = pnand %p152, %p153
      %p155 = pneg %p154
      // Predicated region
      $region9: #{multi_head_attention.4} parent=5 // pred_check
        _
      $region10: #{multi_head_attention.4} parent=5 // pred_check_branch
        %157 = sbr.rel (%p154) target = $region12
      $region11: #{multi_head_attention.4} parent=5 // pred_region
        %s158 = ssub.s32 %s14, 1
      $region12: #{multi_head_attention.4} parent=5 // pred_fallthru
        _
      %p159 = scmp.lt.s32.totalorder %s14, 2
      // Predicated region
      $region13: #{multi_head_attention.4} parent=5 // pred_check
        %p160 = pneg %p159
      $region14: #{multi_head_attention.4} parent=5 // pred_check_branch
        %162 = sbr.rel (%p160) target = $region16
      $region15: #{multi_head_attention.4} parent=5 // pred_region
        // Predicated region
        $region17: #{multi_head_attention.4} parent=15 // pred_check
          %p163 = pneg %p34
        $region18: #{multi_head_attention.4} parent=15 // pred_check_branch
          %165 = sbr.rel (%p163) target = $region20
        $region19: #{multi_head_attention.4} parent=15 // pred_region
          %p166 = scmp.lt.s32.totalorder %s14, 1
          %s167 = scalar_select %p166, %s14, 1
          %s168 = smul.addr %s167, 8
          %s169 = scalar_lea.vmem %s0, %s168
        $region20: #{multi_head_attention.4} parent=15 // pred_fallthru
          _
        // Predicated region
        $region21: #{multi_head_attention.4} parent=15 // pred_check
          %p170 = pneg %p60
        $region22: #{multi_head_attention.4} parent=15 // pred_check_branch
          %172 = sbr.rel (%p170) target = $region24
        $region23: #{multi_head_attention.4} parent=15 // pred_region
          %p173 = scmp.lt.s32.totalorder %s14, 1
          %s174 = scalar_select %p173, %s14, 1
          %s175 = smul.addr %s174, 8
          %s176 = scalar_lea.vmem %s1, %s175
        $region24: #{multi_head_attention.4} parent=15 // pred_fallthru
          _
        // Predicated region
        $region25: #{multi_head_attention.4} parent=15 // pred_check
          %p177 = pneg %p86
        $region26: #{multi_head_attention.4} parent=15 // pred_check_branch
          %179 = sbr.rel (%p177) target = $region28
        $region27: #{multi_head_attention.4} parent=15 // pred_region
          %p180 = scmp.lt.s32.totalorder %s14, 1
          %s181 = scalar_select %p180, %s14, 1
          %s182 = smul.addr %s181, 8
          %s183 = scalar_lea.vmem %s2, %s182
        $region28: #{multi_head_attention.4} parent=15 // pred_fallthru
          _
      $region16: #{multi_head_attention.4} parent=5 // pred_fallthru
        _
      %p184 = scmp.le.s32.totalorder 1, %s14
      %p185 = scmp.lt.s32.totalorder %s14, 3
      %p186 = pnand %p184, %p185
      %p187 = pneg %p186
      // Predicated region
      $region29: #{multi_head_attention.4} parent=5 // pred_check
        _
      $region30: #{multi_head_attention.4} parent=5 // pred_check_branch
        %189 = sbr.rel (%p186) target = $region32
      $region31: #{multi_head_attention.4} parent=5 // pred_region
        %s190 = ssub.s32 %s14, 1
        %p191 = scmp.lt.s32.totalorder %s19, 1
        %s192 = scalar_select %p191, %s19, 1
        %s193 = smul.addr %s192, 8
        %s194 = scalar_lea.vmem %s0, %s193
        %p195 = pneg %p40
        %p196 = pneg %p37
        %p197 = scmp.lt.s32.totalorder %s19, 1
        %s198 = scalar_select %p197, %s19, 1
        %s199 = smul.addr %s198, 8
        %s200 = scalar_lea.vmem %s1, %s199
        %p201 = pneg %p66
        %p202 = pneg %p63
        %p203 = scmp.lt.s32.totalorder %s19, 1
        %s204 = scalar_select %p203, %s19, 1
        %s205 = smul.addr %s204, 8
        %s206 = scalar_lea.vmem %s2, %s205
        %p207 = pneg %p92
        %p208 = pneg %p89
        %p209 = pneg %p118
        %p210 = pneg %p115
        %p211 = scmp.lt.s32.totalorder %s19, 1
        %s212 = scalar_select %p211, %s19, 1
        %s213 = smul.addr %s212, 8
        %s214 = scalar_lea.vmem %s3, %s213
        %p215 = pneg %p144
        %p216 = pneg %p141
        %s217 = sand.u32 %s131, 1
        %s218 = scalar_lea.sflag [#allocation3], %s217
        %s219 = sand.u32 %s131, 1
        %s220 = smul.addr %s219, 32
        %s221 = scalar_lea.vmem [#allocation2], %s220
        %p222 = scmp.lt.s32.totalorder %s19, 1
        %s223 = scalar_select %p222, %s19, 1
        %s224 = smul.addr %s223, 8
        %s225 = scalar_lea.vmem %s0, %s224
        %p226 = scmp.lt.s32.totalorder %s19, 1
        %s227 = scalar_select %p226, %s19, 1
        %s228 = smul.addr %s227, 8
        %s229 = scalar_lea.vmem %s1, %s228
        %p230 = scmp.lt.s32.totalorder %s19, 1
        %s231 = scalar_select %p230, %s19, 1
        %s232 = smul.addr %s231, 8
        %s233 = scalar_lea.vmem %s2, %s232
        %p234 = scmp.lt.s32.totalorder %s19, 1
        %s235 = scalar_select %p234, %s19, 1
        %s236 = smul.addr %s235, 8
        %s237 = scalar_lea.vmem %s3, %s236
        %v238 = vld [vmem:[%s225] sm:$0xff]
        %v239 = vld [vmem:[%s229] sm:$0xff]
        %v240 = vld [vmem:[%s233] sm:$0xff]
        %v241 = vmul.f32 %v238, 0.17677669
        %vm242 = vcmask 261120
        %v244 = vsel %vm242, %v241, 0
        %v247 = vsel %vm242, %v239, 0
        %249 = vmatprep.subr.mxu0 0.0
        %250 = vmatpush1.xpose.msra.mxu0 0.0
        %251 = vmatprep.subr.mxu0 0.0
        %252 = vmatpush1.xpose.msra.mxu0 0.0
        %253 = vmatprep.subr.mxu0 0.0
        %254 = vmatpush1.xpose.msra.mxu0 0.0
        %255 = vmatprep.subr.mxu0 0.0
        %256 = vmatpush1.xpose.msra.mxu0 0.0
        %257 = vmatprep.subr.mxu0 0.0
        %258 = vmatpush1.xpose.msra.mxu0 0.0
        %259 = vmatprep.subr.mxu0 0.0
        %260 = vmatpush1.xpose.msra.mxu0 0.0
        %261 = vmatprep.subr.mxu0 0.0
        %262 = vmatpush1.xpose.msra.mxu0 0.0
        %263 = vmatprep.subr.mxu0 0.0
        %264 = vmatpush1.xpose.msra.mxu0 0.0
        %265 = vmatprep.subr.mxu0 0.0
        %266 = vmatpush1.xpose.msra.mxu0 0.0
        %267 = vmatprep.subr.mxu0 0.0
        %268 = vmatpush1.xpose.msra.mxu0 0.0
        %269 = vmatprep.subr.mxu0 0.0
        %270 = vmatpush1.xpose.msra.mxu0 0.0
        %271 = vmatprep.subr.mxu0 0.0
        %272 = vmatpush1.xpose.msra.mxu0 0.0
        %273 = vmatprep.subr.mxu0 0.0
        %274 = vmatpush1.xpose.msra.mxu0 0.0
        %275 = vmatprep.subr.mxu0 0.0
        %276 = vmatpush1.xpose.msra.mxu0 0.0
        %277 = vmatprep.subr.mxu0 0.0
        %278 = vmatpush1.xpose.msra.mxu0 0.0
        %279 = vmatprep.subr.mxu0 0.0
        %280 = vmatpush1.xpose.msra.mxu0 %v247
        %281 = vmatprep.subr.mxu0 0.0
        %282 = vmatpush2.xpose.msra.mxu0 0.0
        %283 = vmatprep.subr.mxu0 0.0
        %284 = vmatpush2.xpose.msra.mxu0 0.0
        %285 = vmatprep.subr.mxu0 0.0
        %286 = vmatpush2.xpose.msra.mxu0 0.0
        %287 = vmatprep.subr.mxu0 0.0
        %288 = vmatpush2.xpose.msra.mxu0 0.0
        %289 = vmatprep.subr.mxu0 0.0
        %290 = vmatpush2.xpose.msra.mxu0 0.0
        %291 = vmatprep.subr.mxu0 0.0
        %292 = vmatpush2.xpose.msra.mxu0 0.0
        %293 = vmatprep.subr.mxu0 0.0
        %294 = vmatpush2.xpose.msra.mxu0 0.0
        %295 = vmatprep.subr.mxu0 0.0
        %296 = vmatpush2.xpose.msra.mxu0 0.0
        %297 = vmatprep.subr.mxu0 0.0
        %298 = vmatpush2.xpose.msra.mxu0 0.0
        %299 = vmatprep.subr.mxu0 0.0
        %300 = vmatpush2.xpose.msra.mxu0 0.0
        %301 = vmatprep.subr.mxu0 0.0
        %302 = vmatpush2.xpose.msra.mxu0 0.0
        %303 = vmatprep.subr.mxu0 0.0
        %304 = vmatpush2.xpose.msra.mxu0 0.0
        %305 = vmatprep.subr.mxu0 0.0
        %306 = vmatpush2.xpose.msra.mxu0 0.0
        %307 = vmatprep.subr.mxu0 0.0
        %308 = vmatpush2.xpose.msra.mxu0 0.0
        %309 = vmatprep.subr.mxu0 0.0
        %310 = vmatpush2.xpose.msra.mxu0 0.0
        %311 = vmatprep.subr.mxu0 0.0
        %312 = vmatpush2.xpose.msra.mxu0 0.0
        %313 = vmatprep.mubr.f32.mxu0 0.0
        %314 = vmatmul.mubr.f32.gmra.mxu0 %v244
        %v315 = vpop.f32.mrf.mxu0
        %v316 = vadd.f32 0.0, %v315
        %v317 = vpop.f32.mrf.mxu0
        %318 = vdwg.mxu0
        %vm319 = vcmask 64512
        %v320 = vsel %vm319, %v316, -inf
        %321 = vmax.xlane.f32.xlu0 %v320
        %v322 = vpop.xlane.xlu0 %321
        %v323 = vsub.f32 %v316, %v322
        %v324 = vmul.f32 %v323, 1.442695
        %v325 = vpow.pop %v324
        %v326 = vsel %vm319, %v325, 0.0
        %327 = vadd.xlane.f32.xlu0 %v326
        %v328 = vpop.xlane.xlu0 %327
        %v329 = vrcp.pop %v328
        %v330 = vmul.f32 %v325, %v329
        %331 = vst.msk [vmem:[%s221] sm:$0xff] %vm319, %v330
        %v333 = vsel %vm319, %v330, 0
        %335 = vmatprep.subr.mxu0 0.0
        %336 = vmatpush1.msra.mxu0 0.0
        %337 = vmatprep.subr.mxu0 0.0
        %338 = vmatpush1.msra.mxu0 0.0
        %339 = vmatprep.subr.mxu0 0.0
        %340 = vmatpush1.msra.mxu0 0.0
        %341 = vmatprep.subr.mxu0 0.0
        %342 = vmatpush1.msra.mxu0 0.0
        %343 = vmatprep.subr.mxu0 0.0
        %344 = vmatpush1.msra.mxu0 0.0
        %345 = vmatprep.subr.mxu0 0.0
        %346 = vmatpush1.msra.mxu0 0.0
        %347 = vmatprep.subr.mxu0 0.0
        %348 = vmatpush1.msra.mxu0 0.0
        %349 = vmatprep.subr.mxu0 0.0
        %350 = vmatpush1.msra.mxu0 0.0
        %351 = vmatprep.subr.mxu0 0.0
        %352 = vmatpush1.msra.mxu0 0.0
        %353 = vmatprep.subr.mxu0 0.0
        %354 = vmatpush1.msra.mxu0 0.0
        %355 = vmatprep.subr.mxu0 0.0
        %356 = vmatpush1.msra.mxu0 0.0
        %357 = vmatprep.subr.mxu0 0.0
        %358 = vmatpush1.msra.mxu0 0.0
        %359 = vmatprep.subr.mxu0 0.0
        %360 = vmatpush1.msra.mxu0 0.0
        %361 = vmatprep.subr.mxu0 0.0
        %362 = vmatpush1.msra.mxu0 0.0
        %363 = vmatprep.subr.mxu0 0.0
        %364 = vmatpush1.msra.mxu0 0.0
        %365 = vmatprep.subr.mxu0 0.0
        %366 = vmatpush1.msra.mxu0 %v240
        %367 = vmatprep.subr.mxu0 0.0
        %368 = vmatpush2.msra.mxu0 0.0
        %369 = vmatprep.subr.mxu0 0.0
        %370 = vmatpush2.msra.mxu0 0.0
        %371 = vmatprep.subr.mxu0 0.0
        %372 = vmatpush2.msra.mxu0 0.0
        %373 = vmatprep.subr.mxu0 0.0
        %374 = vmatpush2.msra.mxu0 0.0
        %375 = vmatprep.subr.mxu0 0.0
        %376 = vmatpush2.msra.mxu0 0.0
        %377 = vmatprep.subr.mxu0 0.0
        %378 = vmatpush2.msra.mxu0 0.0
        %379 = vmatprep.subr.mxu0 0.0
        %380 = vmatpush2.msra.mxu0 0.0
        %381 = vmatprep.subr.mxu0 0.0
        %382 = vmatpush2.msra.mxu0 0.0
        %383 = vmatprep.subr.mxu0 0.0
        %384 = vmatpush2.msra.mxu0 0.0
        %385 = vmatprep.subr.mxu0 0.0
        %386 = vmatpush2.msra.mxu0 0.0
        %387 = vmatprep.subr.mxu0 0.0
        %388 = vmatpush2.msra.mxu0 0.0
        %389 = vmatprep.subr.mxu0 0.0
        %390 = vmatpush2.msra.mxu0 0.0
        %391 = vmatprep.subr.mxu0 0.0
        %392 = vmatpush2.msra.mxu0 0.0
        %393 = vmatprep.subr.mxu0 0.0
        %394 = vmatpush2.msra.mxu0 0.0
        %395 = vmatprep.subr.mxu0 0.0
        %396 = vmatpush2.msra.mxu0 0.0
        %397 = vmatprep.subr.mxu0 0.0
        %398 = vmatpush2.msra.mxu0 0.0
        %399 = vmatprep.mubr.f32.mxu0 0.0
        %400 = vmatmul.mubr.f32.gmra.mxu0 %v333
        %v401 = vpop.f32.mrf.mxu0
        %v402 = vadd.f32 0.0, %v401
        %v403 = vpop.f32.mrf.mxu0
        %404 = vdwg.mxu0
        %405 = vrot.lane.b32.xlu0 %v241, 96
        %v406 = vpop.permute.xlu0 %405
        %407 = vrot.lane.b32.xlu0 %v239, 96
        %v408 = vpop.permute.xlu0 %407
        %v409 = vsel %vm242, %v406, 0
        %v411 = vsel %vm242, %v408, 0
        %413 = vmatprep.subr.mxu0 0.0
        %414 = vmatpush1.xpose.msra.mxu0 0.0
        %415 = vmatprep.subr.mxu0 0.0
        %416 = vmatpush1.xpose.msra.mxu0 0.0
        %417 = vmatprep.subr.mxu0 0.0
        %418 = vmatpush1.xpose.msra.mxu0 0.0
        %419 = vmatprep.subr.mxu0 0.0
        %420 = vmatpush1.xpose.msra.mxu0 0.0
        %421 = vmatprep.subr.mxu0 0.0
        %422 = vmatpush1.xpose.msra.mxu0 0.0
        %423 = vmatprep.subr.mxu0 0.0
        %424 = vmatpush1.xpose.msra.mxu0 0.0
        %425 = vmatprep.subr.mxu0 0.0
        %426 = vmatpush1.xpose.msra.mxu0 0.0
        %427 = vmatprep.subr.mxu0 0.0
        %428 = vmatpush1.xpose.msra.mxu0 0.0
        %429 = vmatprep.subr.mxu0 0.0
        %430 = vmatpush1.xpose.msra.mxu0 0.0
        %431 = vmatprep.subr.mxu0 0.0
        %432 = vmatpush1.xpose.msra.mxu0 0.0
        %433 = vmatprep.subr.mxu0 0.0
        %434 = vmatpush1.xpose.msra.mxu0 0.0
        %435 = vmatprep.subr.mxu0 0.0
        %436 = vmatpush1.xpose.msra.mxu0 0.0
        %437 = vmatprep.subr.mxu0 0.0
        %438 = vmatpush1.xpose.msra.mxu0 0.0
        %439 = vmatprep.subr.mxu0 0.0
        %440 = vmatpush1.xpose.msra.mxu0 0.0
        %441 = vmatprep.subr.mxu0 0.0
        %442 = vmatpush1.xpose.msra.mxu0 0.0
        %443 = vmatprep.subr.mxu0 0.0
        %444 = vmatpush1.xpose.msra.mxu0 %v411
        %445 = vmatprep.subr.mxu0 0.0
        %446 = vmatpush2.xpose.msra.mxu0 0.0
        %447 = vmatprep.subr.mxu0 0.0
        %448 = vmatpush2.xpose.msra.mxu0 0.0
        %449 = vmatprep.subr.mxu0 0.0
        %450 = vmatpush2.xpose.msra.mxu0 0.0
        %451 = vmatprep.subr.mxu0 0.0
        %452 = vmatpush2.xpose.msra.mxu0 0.0
        %453 = vmatprep.subr.mxu0 0.0
        %454 = vmatpush2.xpose.msra.mxu0 0.0
        %455 = vmatprep.subr.mxu0 0.0
        %456 = vmatpush2.xpose.msra.mxu0 0.0
        %457 = vmatprep.subr.mxu0 0.0
        %458 = vmatpush2.xpose.msra.mxu0 0.0
        %459 = vmatprep.subr.mxu0 0.0
        %460 = vmatpush2.xpose.msra.mxu0 0.0
        %461 = vmatprep.subr.mxu0 0.0
        %462 = vmatpush2.xpose.msra.mxu0 0.0
        %463 = vmatprep.subr.mxu0 0.0
        %464 = vmatpush2.xpose.msra.mxu0 0.0
        %465 = vmatprep.subr.mxu0 0.0
        %466 = vmatpush2.xpose.msra.mxu0 0.0
        %467 = vmatprep.subr.mxu0 0.0
        %468 = vmatpush2.xpose.msra.mxu0 0.0
        %469 = vmatprep.subr.mxu0 0.0
        %470 = vmatpush2.xpose.msra.mxu0 0.0
        %471 = vmatprep.subr.mxu0 0.0
        %472 = vmatpush2.xpose.msra.mxu0 0.0
        %473 = vmatprep.subr.mxu0 0.0
        %474 = vmatpush2.xpose.msra.mxu0 0.0
        %475 = vmatprep.subr.mxu0 0.0
        %476 = vmatpush2.xpose.msra.mxu0 0.0
        %477 = vmatprep.mubr.f32.mxu0 0.0
        %478 = vmatmul.mubr.f32.gmra.mxu0 %v409
        %v479 = vpop.f32.mrf.mxu0
        %v480 = vadd.f32 0.0, %v479
        %v481 = vpop.f32.mrf.mxu0
        %482 = vdwg.mxu0
        %v483 = vsel %vm319, %v480, -inf
        %484 = vmax.xlane.f32.xlu0 %v483
        %v485 = vpop.xlane.xlu0 %484
        %v486 = vsub.f32 %v480, %v485
        %v487 = vmul.f32 %v486, 1.442695
        %v488 = vpow.pop %v487
        %v489 = vsel %vm319, %v488, 0.0
        %490 = vadd.xlane.f32.xlu0 %v489
        %v491 = vpop.xlane.xlu0 %490
        %v492 = vrcp.pop %v491
        %v493 = vmul.f32 %v488, %v492
        %s494 = scalar_lea.vmem %s221, 8 [#allocation2]
        %495 = vst.msk [vmem:[%s494] sm:$0xff] %vm319, %v493
        %497 = vrot.lane.b32.xlu0 %v240, 96
        %v498 = vpop.permute.xlu0 %497
        %v501 = vsel %vm319, %v493, 0
        %503 = vmatprep.subr.mxu0 0.0
        %504 = vmatpush1.msra.mxu0 0.0
        %505 = vmatprep.subr.mxu0 0.0
        %506 = vmatpush1.msra.mxu0 0.0
        %507 = vmatprep.subr.mxu0 0.0
        %508 = vmatpush1.msra.mxu0 0.0
        %509 = vmatprep.subr.mxu0 0.0
        %510 = vmatpush1.msra.mxu0 0.0
        %511 = vmatprep.subr.mxu0 0.0
        %512 = vmatpush1.msra.mxu0 0.0
        %513 = vmatprep.subr.mxu0 0.0
        %514 = vmatpush1.msra.mxu0 0.0
        %515 = vmatprep.subr.mxu0 0.0
        %516 = vmatpush1.msra.mxu0 0.0
        %517 = vmatprep.subr.mxu0 0.0
        %518 = vmatpush1.msra.mxu0 0.0
        %519 = vmatprep.subr.mxu0 0.0
        %520 = vmatpush1.msra.mxu0 0.0
        %521 = vmatprep.subr.mxu0 0.0
        %522 = vmatpush1.msra.mxu0 0.0
        %523 = vmatprep.subr.mxu0 0.0
        %524 = vmatpush1.msra.mxu0 0.0
        %525 = vmatprep.subr.mxu0 0.0
        %526 = vmatpush1.msra.mxu0 0.0
        %527 = vmatprep.subr.mxu0 0.0
        %528 = vmatpush1.msra.mxu0 0.0
        %529 = vmatprep.subr.mxu0 0.0
        %530 = vmatpush1.msra.mxu0 0.0
        %531 = vmatprep.subr.mxu0 0.0
        %532 = vmatpush1.msra.mxu0 0.0
        %533 = vmatprep.subr.mxu0 0.0
        %534 = vmatpush1.msra.mxu0 %v498
        %535 = vmatprep.subr.mxu0 0.0
        %536 = vmatpush2.msra.mxu0 0.0
        %537 = vmatprep.subr.mxu0 0.0
        %538 = vmatpush2.msra.mxu0 0.0
        %539 = vmatprep.subr.mxu0 0.0
        %540 = vmatpush2.msra.mxu0 0.0
        %541 = vmatprep.subr.mxu0 0.0
        %542 = vmatpush2.msra.mxu0 0.0
        %543 = vmatprep.subr.mxu0 0.0
        %544 = vmatpush2.msra.mxu0 0.0
        %545 = vmatprep.subr.mxu0 0.0
        %546 = vmatpush2.msra.mxu0 0.0
        %547 = vmatprep.subr.mxu0 0.0
        %548 = vmatpush2.msra.mxu0 0.0
        %549 = vmatprep.subr.mxu0 0.0
        %550 = vmatpush2.msra.mxu0 0.0
        %551 = vmatprep.subr.mxu0 0.0
        %552 = vmatpush2.msra.mxu0 0.0
        %553 = vmatprep.subr.mxu0 0.0
        %554 = vmatpush2.msra.mxu0 0.0
        %555 = vmatprep.subr.mxu0 0.0
        %556 = vmatpush2.msra.mxu0 0.0
        %557 = vmatprep.subr.mxu0 0.0
        %558 = vmatpush2.msra.mxu0 0.0
        %559 = vmatprep.subr.mxu0 0.0
        %560 = vmatpush2.msra.mxu0 0.0
        %561 = vmatprep.subr.mxu0 0.0
        %562 = vmatpush2.msra.mxu0 0.0
        %563 = vmatprep.subr.mxu0 0.0
        %564 = vmatpush2.msra.mxu0 0.0
        %565 = vmatprep.subr.mxu0 0.0
        %566 = vmatpush2.msra.mxu0 0.0
        %567 = vmatprep.mubr.f32.mxu0 0.0
        %568 = vmatmul.mubr.f32.gmra.mxu0 %v501
        %v569 = vpop.f32.mrf.mxu0
        %v570 = vadd.f32 0.0, %v569
        %v571 = vpop.f32.mrf.mxu0
        %572 = vdwg.mxu0
        %573 = vrot.lane.b32.xlu0 %v241, 64
        %v574 = vpop.permute.xlu0 %573
        %575 = vrot.lane.b32.xlu0 %v239, 64
        %v576 = vpop.permute.xlu0 %575
        %v577 = vsel %vm242, %v574, 0
        %v579 = vsel %vm242, %v576, 0
        %581 = vmatprep.subr.mxu0 0.0
        %582 = vmatpush1.xpose.msra.mxu0 0.0
        %583 = vmatprep.subr.mxu0 0.0
        %584 = vmatpush1.xpose.msra.mxu0 0.0
        %585 = vmatprep.subr.mxu0 0.0
        %586 = vmatpush1.xpose.msra.mxu0 0.0
        %587 = vmatprep.subr.mxu0 0.0
        %588 = vmatpush1.xpose.msra.mxu0 0.0
        %589 = vmatprep.subr.mxu0 0.0
        %590 = vmatpush1.xpose.msra.mxu0 0.0
        %591 = vmatprep.subr.mxu0 0.0
        %592 = vmatpush1.xpose.msra.mxu0 0.0
        %593 = vmatprep.subr.mxu0 0.0
        %594 = vmatpush1.xpose.msra.mxu0 0.0
        %595 = vmatprep.subr.mxu0 0.0
        %596 = vmatpush1.xpose.msra.mxu0 0.0
        %597 = vmatprep.subr.mxu0 0.0
        %598 = vmatpush1.xpose.msra.mxu0 0.0
        %599 = vmatprep.subr.mxu0 0.0
        %600 = vmatpush1.xpose.msra.mxu0 0.0
        %601 = vmatprep.subr.mxu0 0.0
        %602 = vmatpush1.xpose.msra.mxu0 0.0
        %603 = vmatprep.subr.mxu0 0.0
        %604 = vmatpush1.xpose.msra.mxu0 0.0
        %605 = vmatprep.subr.mxu0 0.0
        %606 = vmatpush1.xpose.msra.mxu0 0.0
        %607 = vmatprep.subr.mxu0 0.0
        %608 = vmatpush1.xpose.msra.mxu0 0.0
        %609 = vmatprep.subr.mxu0 0.0
        %610 = vmatpush1.xpose.msra.mxu0 0.0
        %611 = vmatprep.subr.mxu0 0.0
        %612 = vmatpush1.xpose.msra.mxu0 %v579
        %613 = vmatprep.subr.mxu0 0.0
        %614 = vmatpush2.xpose.msra.mxu0 0.0
        %615 = vmatprep.subr.mxu0 0.0
        %616 = vmatpush2.xpose.msra.mxu0 0.0
        %617 = vmatprep.subr.mxu0 0.0
        %618 = vmatpush2.xpose.msra.mxu0 0.0
        %619 = vmatprep.subr.mxu0 0.0
        %620 = vmatpush2.xpose.msra.mxu0 0.0
        %621 = vmatprep.subr.mxu0 0.0
        %622 = vmatpush2.xpose.msra.mxu0 0.0
        %623 = vmatprep.subr.mxu0 0.0
        %624 = vmatpush2.xpose.msra.mxu0 0.0
        %625 = vmatprep.subr.mxu0 0.0
        %626 = vmatpush2.xpose.msra.mxu0 0.0
        %627 = vmatprep.subr.mxu0 0.0
        %628 = vmatpush2.xpose.msra.mxu0 0.0
        %629 = vmatprep.subr.mxu0 0.0
        %630 = vmatpush2.xpose.msra.mxu0 0.0
        %631 = vmatprep.subr.mxu0 0.0
        %632 = vmatpush2.xpose.msra.mxu0 0.0
        %633 = vmatprep.subr.mxu0 0.0
        %634 = vmatpush2.xpose.msra.mxu0 0.0
        %635 = vmatprep.subr.mxu0 0.0
        %636 = vmatpush2.xpose.msra.mxu0 0.0
        %637 = vmatprep.subr.mxu0 0.0
        %638 = vmatpush2.xpose.msra.mxu0 0.0
        %639 = vmatprep.subr.mxu0 0.0
        %640 = vmatpush2.xpose.msra.mxu0 0.0
        %641 = vmatprep.subr.mxu0 0.0
        %642 = vmatpush2.xpose.msra.mxu0 0.0
        %643 = vmatprep.subr.mxu0 0.0
        %644 = vmatpush2.xpose.msra.mxu0 0.0
        %645 = vmatprep.mubr.f32.mxu0 0.0
        %646 = vmatmul.mubr.f32.gmra.mxu0 %v577
        %v647 = vpop.f32.mrf.mxu0
        %v648 = vadd.f32 0.0, %v647
        %v649 = vpop.f32.mrf.mxu0
        %650 = vdwg.mxu0
        %v651 = vsel %vm319, %v648, -inf
        %652 = vmax.xlane.f32.xlu0 %v651
        %v653 = vpop.xlane.xlu0 %652
        %v654 = vsub.f32 %v648, %v653
        %v655 = vmul.f32 %v654, 1.442695
        %v656 = vpow.pop %v655
        %v657 = vsel %vm319, %v656, 0.0
        %658 = vadd.xlane.f32.xlu0 %v657
        %v659 = vpop.xlane.xlu0 %658
        %v660 = vrcp.pop %v659
        %v661 = vmul.f32 %v656, %v660
        %s662 = scalar_lea.vmem %s221, 16 [#allocation2]
        %663 = vst.msk [vmem:[%s662] sm:$0xff] %vm319, %v661
        %664 = vrot.lane.b32.xlu0 %v240, 64
        %v665 = vpop.permute.xlu0 %664
        %v668 = vsel %vm319, %v661, 0
        %670 = vmatprep.subr.mxu0 0.0
        %671 = vmatpush1.msra.mxu0 0.0
        %672 = vmatprep.subr.mxu0 0.0
        %673 = vmatpush1.msra.mxu0 0.0
        %674 = vmatprep.subr.mxu0 0.0
        %675 = vmatpush1.msra.mxu0 0.0
        %676 = vmatprep.subr.mxu0 0.0
        %677 = vmatpush1.msra.mxu0 0.0
        %678 = vmatprep.subr.mxu0 0.0
        %679 = vmatpush1.msra.mxu0 0.0
        %680 = vmatprep.subr.mxu0 0.0
        %681 = vmatpush1.msra.mxu0 0.0
        %682 = vmatprep.subr.mxu0 0.0
        %683 = vmatpush1.msra.mxu0 0.0
        %684 = vmatprep.subr.mxu0 0.0
        %685 = vmatpush1.msra.mxu0 0.0
        %686 = vmatprep.subr.mxu0 0.0
        %687 = vmatpush1.msra.mxu0 0.0
        %688 = vmatprep.subr.mxu0 0.0
        %689 = vmatpush1.msra.mxu0 0.0
        %690 = vmatprep.subr.mxu0 0.0
        %691 = vmatpush1.msra.mxu0 0.0
        %692 = vmatprep.subr.mxu0 0.0
        %693 = vmatpush1.msra.mxu0 0.0
        %694 = vmatprep.subr.mxu0 0.0
        %695 = vmatpush1.msra.mxu0 0.0
        %696 = vmatprep.subr.mxu0 0.0
        %697 = vmatpush1.msra.mxu0 0.0
        %698 = vmatprep.subr.mxu0 0.0
        %699 = vmatpush1.msra.mxu0 0.0
        %700 = vmatprep.subr.mxu0 0.0
        %701 = vmatpush1.msra.mxu0 %v665
        %702 = vmatprep.subr.mxu0 0.0
        %703 = vmatpush2.msra.mxu0 0.0
        %704 = vmatprep.subr.mxu0 0.0
        %705 = vmatpush2.msra.mxu0 0.0
        %706 = vmatprep.subr.mxu0 0.0
        %707 = vmatpush2.msra.mxu0 0.0
        %708 = vmatprep.subr.mxu0 0.0
        %709 = vmatpush2.msra.mxu0 0.0
        %710 = vmatprep.subr.mxu0 0.0
        %711 = vmatpush2.msra.mxu0 0.0
        %712 = vmatprep.subr.mxu0 0.0
        %713 = vmatpush2.msra.mxu0 0.0
        %714 = vmatprep.subr.mxu0 0.0
        %715 = vmatpush2.msra.mxu0 0.0
        %716 = vmatprep.subr.mxu0 0.0
        %717 = vmatpush2.msra.mxu0 0.0
        %718 = vmatprep.subr.mxu0 0.0
        %719 = vmatpush2.msra.mxu0 0.0
        %720 = vmatprep.subr.mxu0 0.0
        %721 = vmatpush2.msra.mxu0 0.0
        %722 = vmatprep.subr.mxu0 0.0
        %723 = vmatpush2.msra.mxu0 0.0
        %724 = vmatprep.subr.mxu0 0.0
        %725 = vmatpush2.msra.mxu0 0.0
        %726 = vmatprep.subr.mxu0 0.0
        %727 = vmatpush2.msra.mxu0 0.0
        %728 = vmatprep.subr.mxu0 0.0
        %729 = vmatpush2.msra.mxu0 0.0
        %730 = vmatprep.subr.mxu0 0.0
        %731 = vmatpush2.msra.mxu0 0.0
        %732 = vmatprep.subr.mxu0 0.0
        %733 = vmatpush2.msra.mxu0 0.0
        %734 = vmatprep.mubr.f32.mxu0 0.0
        %735 = vmatmul.mubr.f32.gmra.mxu0 %v668
        %v736 = vpop.f32.mrf.mxu0
        %v737 = vadd.f32 0.0, %v736
        %v738 = vpop.f32.mrf.mxu0
        %739 = vdwg.mxu0
        %740 = vrot.lane.b32.xlu0 %v241, 32
        %v741 = vpop.permute.xlu0 %740
        %742 = vrot.lane.b32.xlu0 %v239, 32
        %v743 = vpop.permute.xlu0 %742
        %v744 = vsel %vm242, %v741, 0
        %v746 = vsel %vm242, %v743, 0
        %748 = vmatprep.subr.mxu0 0.0
        %749 = vmatpush1.xpose.msra.mxu0 0.0
        %750 = vmatprep.subr.mxu0 0.0
        %751 = vmatpush1.xpose.msra.mxu0 0.0
        %752 = vmatprep.subr.mxu0 0.0
        %753 = vmatpush1.xpose.msra.mxu0 0.0
        %754 = vmatprep.subr.mxu0 0.0
        %755 = vmatpush1.xpose.msra.mxu0 0.0
        %756 = vmatprep.subr.mxu0 0.0
        %757 = vmatpush1.xpose.msra.mxu0 0.0
        %758 = vmatprep.subr.mxu0 0.0
        %759 = vmatpush1.xpose.msra.mxu0 0.0
        %760 = vmatprep.subr.mxu0 0.0
        %761 = vmatpush1.xpose.msra.mxu0 0.0
        %762 = vmatprep.subr.mxu0 0.0
        %763 = vmatpush1.xpose.msra.mxu0 0.0
        %764 = vmatprep.subr.mxu0 0.0
        %765 = vmatpush1.xpose.msra.mxu0 0.0
        %766 = vmatprep.subr.mxu0 0.0
        %767 = vmatpush1.xpose.msra.mxu0 0.0
        %768 = vmatprep.subr.mxu0 0.0
        %769 = vmatpush1.xpose.msra.mxu0 0.0
        %770 = vmatprep.subr.mxu0 0.0
        %771 = vmatpush1.xpose.msra.mxu0 0.0
        %772 = vmatprep.subr.mxu0 0.0
        %773 = vmatpush1.xpose.msra.mxu0 0.0
        %774 = vmatprep.subr.mxu0 0.0
        %775 = vmatpush1.xpose.msra.mxu0 0.0
        %776 = vmatprep.subr.mxu0 0.0
        %777 = vmatpush1.xpose.msra.mxu0 0.0
        %778 = vmatprep.subr.mxu0 0.0
        %779 = vmatpush1.xpose.msra.mxu0 %v746
        %780 = vmatprep.subr.mxu0 0.0
        %781 = vmatpush2.xpose.msra.mxu0 0.0
        %782 = vmatprep.subr.mxu0 0.0
        %783 = vmatpush2.xpose.msra.mxu0 0.0
        %784 = vmatprep.subr.mxu0 0.0
        %785 = vmatpush2.xpose.msra.mxu0 0.0
        %786 = vmatprep.subr.mxu0 0.0
        %787 = vmatpush2.xpose.msra.mxu0 0.0
        %788 = vmatprep.subr.mxu0 0.0
        %789 = vmatpush2.xpose.msra.mxu0 0.0
        %790 = vmatprep.subr.mxu0 0.0
        %791 = vmatpush2.xpose.msra.mxu0 0.0
        %792 = vmatprep.subr.mxu0 0.0
        %793 = vmatpush2.xpose.msra.mxu0 0.0
        %794 = vmatprep.subr.mxu0 0.0
        %795 = vmatpush2.xpose.msra.mxu0 0.0
        %796 = vmatprep.subr.mxu0 0.0
        %797 = vmatpush2.xpose.msra.mxu0 0.0
        %798 = vmatprep.subr.mxu0 0.0
        %799 = vmatpush2.xpose.msra.mxu0 0.0
        %800 = vmatprep.subr.mxu0 0.0
        %801 = vmatpush2.xpose.msra.mxu0 0.0
        %802 = vmatprep.subr.mxu0 0.0
        %803 = vmatpush2.xpose.msra.mxu0 0.0
        %804 = vmatprep.subr.mxu0 0.0
        %805 = vmatpush2.xpose.msra.mxu0 0.0
        %806 = vmatprep.subr.mxu0 0.0
        %807 = vmatpush2.xpose.msra.mxu0 0.0
        %808 = vmatprep.subr.mxu0 0.0
        %809 = vmatpush2.xpose.msra.mxu0 0.0
        %810 = vmatprep.subr.mxu0 0.0
        %811 = vmatpush2.xpose.msra.mxu0 0.0
        %812 = vmatprep.mubr.f32.mxu0 0.0
        %813 = vmatmul.mubr.f32.gmra.mxu0 %v744
        %v814 = vpop.f32.mrf.mxu0
        %v815 = vadd.f32 0.0, %v814
        %v816 = vpop.f32.mrf.mxu0
        %817 = vdwg.mxu0
        %v818 = vsel %vm319, %v815, -inf
        %819 = vmax.xlane.f32.xlu0 %v818
        %v820 = vpop.xlane.xlu0 %819
        %v821 = vsub.f32 %v815, %v820
        %v822 = vmul.f32 %v821, 1.442695
        %v823 = vpow.pop %v822
        %v824 = vsel %vm319, %v823, 0.0
        %825 = vadd.xlane.f32.xlu0 %v824
        %v826 = vpop.xlane.xlu0 %825
        %v827 = vrcp.pop %v826
        %v828 = vmul.f32 %v823, %v827
        %s829 = scalar_lea.vmem %s221, 24 [#allocation2]
        %830 = vst.msk [vmem:[%s829] sm:$0xff] %vm319, %v828
        %831 = vrot.lane.b32.xlu0 %v240, 32
        %v832 = vpop.permute.xlu0 %831
        %v835 = vsel %vm319, %v828, 0
        %837 = vmatprep.subr.mxu0 0.0
        %838 = vmatpush1.msra.mxu0 0.0
        %839 = vmatprep.subr.mxu0 0.0
        %840 = vmatpush1.msra.mxu0 0.0
        %841 = vmatprep.subr.mxu0 0.0
        %842 = vmatpush1.msra.mxu0 0.0
        %843 = vmatprep.subr.mxu0 0.0
        %844 = vmatpush1.msra.mxu0 0.0
        %845 = vmatprep.subr.mxu0 0.0
        %846 = vmatpush1.msra.mxu0 0.0
        %847 = vmatprep.subr.mxu0 0.0
        %848 = vmatpush1.msra.mxu0 0.0
        %849 = vmatprep.subr.mxu0 0.0
        %850 = vmatpush1.msra.mxu0 0.0
        %851 = vmatprep.subr.mxu0 0.0
        %852 = vmatpush1.msra.mxu0 0.0
        %853 = vmatprep.subr.mxu0 0.0
        %854 = vmatpush1.msra.mxu0 0.0
        %855 = vmatprep.subr.mxu0 0.0
        %856 = vmatpush1.msra.mxu0 0.0
        %857 = vmatprep.subr.mxu0 0.0
        %858 = vmatpush1.msra.mxu0 0.0
        %859 = vmatprep.subr.mxu0 0.0
        %860 = vmatpush1.msra.mxu0 0.0
        %861 = vmatprep.subr.mxu0 0.0
        %862 = vmatpush1.msra.mxu0 0.0
        %863 = vmatprep.subr.mxu0 0.0
        %864 = vmatpush1.msra.mxu0 0.0
        %865 = vmatprep.subr.mxu0 0.0
        %866 = vmatpush1.msra.mxu0 0.0
        %867 = vmatprep.subr.mxu0 0.0
        %868 = vmatpush1.msra.mxu0 %v832
        %869 = vmatprep.subr.mxu0 0.0
        %870 = vmatpush2.msra.mxu0 0.0
        %871 = vmatprep.subr.mxu0 0.0
        %872 = vmatpush2.msra.mxu0 0.0
        %873 = vmatprep.subr.mxu0 0.0
        %874 = vmatpush2.msra.mxu0 0.0
        %875 = vmatprep.subr.mxu0 0.0
        %876 = vmatpush2.msra.mxu0 0.0
        %877 = vmatprep.subr.mxu0 0.0
        %878 = vmatpush2.msra.mxu0 0.0
        %879 = vmatprep.subr.mxu0 0.0
        %880 = vmatpush2.msra.mxu0 0.0
        %881 = vmatprep.subr.mxu0 0.0
        %882 = vmatpush2.msra.mxu0 0.0
        %883 = vmatprep.subr.mxu0 0.0
        %884 = vmatpush2.msra.mxu0 0.0
        %885 = vmatprep.subr.mxu0 0.0
        %886 = vmatpush2.msra.mxu0 0.0
        %887 = vmatprep.subr.mxu0 0.0
        %888 = vmatpush2.msra.mxu0 0.0
        %889 = vmatprep.subr.mxu0 0.0
        %890 = vmatpush2.msra.mxu0 0.0
        %891 = vmatprep.subr.mxu0 0.0
        %892 = vmatpush2.msra.mxu0 0.0
        %893 = vmatprep.subr.mxu0 0.0
        %894 = vmatpush2.msra.mxu0 0.0
        %895 = vmatprep.subr.mxu0 0.0
        %896 = vmatpush2.msra.mxu0 0.0
        %897 = vmatprep.subr.mxu0 0.0
        %898 = vmatpush2.msra.mxu0 0.0
        %899 = vmatprep.subr.mxu0 0.0
        %900 = vmatpush2.msra.mxu0 0.0
        %901 = vmatprep.mubr.f32.mxu0 0.0
        %902 = vmatmul.mubr.f32.gmra.mxu0 %v835
        %v903 = vpop.f32.mrf.mxu0
        %v904 = vadd.f32 0.0, %v903
        %v905 = vpop.f32.mrf.mxu0
        %906 = vdwg.mxu0
        %908 = vrot.lane.b32.xlu0 %v570, 32
        %v909 = vpop.permute.xlu0 %908
        %912 = vrot.lane.b32.xlu0 %v737, 64
        %v913 = vpop.permute.xlu0 %912
        %916 = vrot.lane.b32.xlu0 %v904, 96
        %v917 = vpop.permute.xlu0 %916
        %v919 = vsel %vm242, %v402, %v909
        %vm920 = vcmask 523264
        %v921 = vsel %vm920, %v919, %v913
        %vm922 = vcmask 785408
        %v923 = vsel %vm922, %v921, %v917
        %924 = vst [vmem:[%s237] sm:$0xff] %v923
        %p925 = scmp.lt.s32.totalorder %s19, 1
        %s926 = scalar_select %p925, %s19, 1
        %s927 = smul.addr %s926, 8
        %s928 = scalar_lea.vmem %s3, %s927
        %s929 = sand.u32 %s131, 1
        %s930 = scalar_lea.sflag [#allocation3], %s929
        %s931 = sand.u32 %s131, 1
        %s932 = smul.addr %s931, 32
        %s933 = scalar_lea.vmem [#allocation2], %s932
        // Predicated region
        $region33: #{multi_head_attention.4} parent=31 // pred_check
          %p934 = pneg %p115
        $region34: #{multi_head_attention.4} parent=31 // pred_check_branch
          %936 = sbr.rel (%p934) target = $region36
        $region35: #{multi_head_attention.4} parent=31 // pred_region
          _
        $region36: #{multi_head_attention.4} parent=31 // pred_fallthru
          _
        // Predicated region
        $region37: #{multi_head_attention.4} parent=31 // pred_check
          %p937 = pneg %p141
        $region38: #{multi_head_attention.4} parent=31 // pred_check_branch
          %939 = sbr.rel (%p937) target = $region40
        $region39: #{multi_head_attention.4} parent=31 // pred_region
          %s941 = ssub.s32 512, 512
          %942 = vsyncadd %s930, %s941
          %s943 = smul.addr %s19, 4
          %s944 = smul.addr %s943, 128
          %s945 = scalar_lea.hbm %s4, %s944
          %s946 = sshll.u32 %s933, 4
          %s947 = int_to_ptr.vmem [resolvable:$true] %s946
          %952 = dma.vmem_to_hbm [thread:$0]  %s947, 512, %s945, %s930, 128, 128, 8
        $region40: #{multi_head_attention.4} parent=31 // pred_fallthru
          _
      $region32: #{multi_head_attention.4} parent=5 // pred_fallthru
        _
      %p953 = scmp.le.s32.totalorder 2, %s14
      // Predicated region
      $region41: #{multi_head_attention.4} parent=5 // pred_check
        %p954 = pneg %p953
      $region42: #{multi_head_attention.4} parent=5 // pred_check_branch
        %956 = sbr.rel (%p954) target = $region44
      $region43: #{multi_head_attention.4} parent=5 // pred_region
        %s957 = ssub.s32 %s14, 2
        // Predicated region
        $region45: #{multi_head_attention.4} parent=43 // pred_check
          %p958 = pneg %p121
        $region46: #{multi_head_attention.4} parent=43 // pred_check_branch
          %960 = sbr.rel (%p958) target = $region48
        $region47: #{multi_head_attention.4} parent=43 // pred_region
          %p961 = scmp.lt.s32.totalorder %s20, 1
          %s962 = scalar_select %p961, %s20, 1
          %s963 = smul.addr %s962, 8
          %s964 = scalar_lea.vmem %s3, %s963
        $region48: #{multi_head_attention.4} parent=43 // pred_fallthru
          _
        // Predicated region
        $region49: #{multi_head_attention.4} parent=43 // pred_check
          %p965 = pneg %p147
        $region50: #{multi_head_attention.4} parent=43 // pred_check_branch
          %967 = sbr.rel (%p965) target = $region52
        $region51: #{multi_head_attention.4} parent=43 // pred_region
          %s968 = sand.u32 %s132, 1
          %s969 = scalar_lea.sflag [#allocation3], %s968
          %s970 = sand.u32 %s132, 1
          %s971 = smul.addr %s970, 32
          %s972 = scalar_lea.vmem [#allocation2], %s971
          %973 = dma.done %s969, 512
        $region52: #{multi_head_attention.4} parent=43 // pred_fallthru
          _
      $region44: #{multi_head_attention.4} parent=5 // pred_fallthru
        _
    $region6: #{multi_head_attention.4} parent=1 // loop_footer
      %s18 = sadd.s32 1, %s14
    $region7: #{multi_head_attention.4} parent=1 // loop_footer_branch
      %13 = sbr.rel target = $region3
    $region8: #{multi_head_attention.4} parent=1 // loop_exit
      _
    %974 = vsyncpa [#allocation3], 1
    %s975 = scalar_lea.sflag [#allocation3], 1
    %976 = vsyncpa %s975, 1

</llo_original>
